<compile_context>
chip_gen: v7x
topology: tpu7x:2x2x1
jax: 0.10.0
libtpu: 0.0.40
codegen_flags: <defaults>
</compile_context>

<pallas_src>
import functools
import math

import jax
import jax.numpy as jnp
from jax.experimental import pallas as pl
from jax.experimental.pallas import tpu as pltpu

NEG_SLOPE = 0.2
BN_EPS = 1e-5


# ----------------------------- Pallas kernels -----------------------------

def _conv_lrelu_kernel(a_ref, w_ref, b_ref, o_ref):
    """(tm, K)bf16 @ (K, N)bf16 + bias, LeakyReLU(0.2); f32 accumulation."""
    z = jnp.dot(a_ref[...], w_ref[...], preferred_element_type=jnp.float32)
    z = z + b_ref[...]
    o_ref[...] = jnp.where(z > 0, z, NEG_SLOPE * z).astype(o_ref.dtype)


def _conv_bn_lrelu_kernel(a_ref, w_ref, b_ref, g_ref, beta_ref, o_ref, *, eps):
    """Fused conv matmul + training-mode BatchNorm + LeakyReLU.

    The full (M, N) conv output lives in VMEM, so per-channel batch stats are
    reduced in-register (no extra HBM pass) and the affine+activation epilogue
    is applied before the single store.
    """
    z = jnp.dot(a_ref[...], w_ref[...], preferred_element_type=jnp.float32)
    z = z + b_ref[...]                                       # (M, N) f32
    mean = jnp.mean(z, axis=0, keepdims=True)                # (1, N)
    cent = z - mean
    var = jnp.mean(cent * cent, axis=0, keepdims=True)       # biased, >= 0
    scale = g_ref[...] * jax.lax.rsqrt(var + eps)
    y = cent * scale + beta_ref[...]
    o_ref[...] = jnp.where(y > 0, y, NEG_SLOPE * y).astype(o_ref.dtype)


def _conv_bn_lrelu_linear_kernel(a_ref, w_ref, b_ref, g_ref, beta_ref,
                                 wl_ref, sel_ref, bl_ref, o_ref, *, eps):
    """conv4 + BN + LeakyReLU + Linear, all fused.

    wl_ref is the Linear weight pre-permuted to the NHWC row/channel layout of
    the conv4 output and tiled over the batch, so the Linear reduces to an
    elementwise product, a lane reduction and a tiny (B, M) selection matmul.
    """
    z = jnp.dot(a_ref[...], w_ref[...], preferred_element_type=jnp.float32)
    z = z + b_ref[...]
    mean = jnp.mean(z, axis=0, keepdims=True)
    cent = z - mean
    var = jnp.mean(cent * cent, axis=0, keepdims=True)
    scale = g_ref[...] * jax.lax.rsqrt(var + eps)
    y = cent * scale + beta_ref[...]
    y = jnp.where(y > 0, y, NEG_SLOPE * y)                   # (M, C) f32
    prod = y * wl_ref[...]                                   # fold Linear weight
    per_batch = jnp.dot(sel_ref[...], prod,
                        preferred_element_type=jnp.float32)  # (B, C)
    o_ref[...] = jnp.sum(per_batch, axis=1, keepdims=True) + bl_ref[...]


# ----------------------------- kernel wrappers -----------------------------

def conv_lrelu(a, w, b, *, tm=128):
    """Row-tiled conv matmul + LeakyReLU (no BN). 'parallel' grid for megacore."""
    m, k = a.shape
    n = w.shape[1]
    if m % tm:
        tm = m
    return pl.pallas_call(
        _conv_lrelu_kernel,
        out_shape=jax.ShapeDtypeStruct((m, n), jnp.bfloat16),
        grid=(m // tm,),
        in_specs=[
            pl.BlockSpec((tm, k), lambda i: (i, 0)),
            pl.BlockSpec((k, n), lambda i: (0, 0)),
            pl.BlockSpec((1, n), lambda i: (0, 0)),
        ],
        out_specs=pl.BlockSpec((tm, n), lambda i: (i, 0)),
        compiler_params=pltpu.CompilerParams(
            dimension_semantics=("parallel",)),
    )(a, w, b)


def conv_bn_lrelu(a, w, b, gamma, beta, *, eps=BN_EPS):
    """Single-invocation fully fused conv + BN + LeakyReLU (whole arrays in VMEM)."""
    m = a.shape[0]
    n = w.shape[1]
    kern = functools.partial(_conv_bn_lrelu_kernel, eps=eps)
    return pl.pallas_call(
        kern,
        out_shape=jax.ShapeDtypeStruct((m, n), jnp.bfloat16),
    )(a, w, b, gamma, beta)


def conv_bn_lrelu_linear(a, w, b, gamma, beta, wl_rows, sel, bl, *, eps=BN_EPS):
    bsz = sel.shape[0]
    kern = functools.partial(_conv_bn_lrelu_linear_kernel, eps=eps)
    return pl.pallas_call(
        kern,
        out_shape=jax.ShapeDtypeStruct((bsz, 1), jnp.float32),
    )(a, w, b, gamma, beta, wl_rows, sel, bl)


# ----------------------------- glue (plain JAX) -----------------------------

def conv_out(size, stride):
    return int(math.ceil(float(size) / float(stride)))


def im2col_nhwc(x, kh=4, kw=4, stride=2, pad=1):
    """NHWC -> (B*Ho*Wo, kh*kw*C) bf16 patch matrix, rows in (b, ho, wo) order.

    Column order is (kh, kw, c), matching _prep_conv_weight.
    """
    b, h, w, c = x.shape
    xp = jnp.pad(x, ((0, 0), (pad, pad), (pad, pad), (0, 0)))
    ho = (h + 2 * pad - kh) // stride + 1
    wo = (w + 2 * pad - kw) // stride + 1
    cols = [xp[:, i:i + stride * ho:stride, j:j + stride * wo:stride, :]
            for i in range(kh) for j in range(kw)]
    patches = jnp.stack(cols, axis=3)              # (B, Ho, Wo, kh*kw, C)
    a = patches.reshape(b * ho * wo, kh * kw * c)
    return a.astype(jnp.bfloat16), ho, wo


def _prep_conv_weight(w):
    """PyTorch (Cout, Cin, kh, kw) conv weight -> (kh*kw*Cin, Cout) bf16 matrix."""
    cout, cin, kh, kw = w.shape
    return (jnp.transpose(w, (2, 3, 1, 0))
            .reshape(kh * kw * cin, cout)
            .astype(jnp.bfloat16))


def init_params(key, d, input_shape):
    s_h, s_w = input_shape
    s_h16 = conv_out(conv_out(conv_out(conv_out(s_h, 2), 2), 2), 2)
    s_w16 = conv_out(conv_out(conv_out(conv_out(s_w, 2), 2), 2), 2)
    # Actual conv output sizes for k=4, s=2, p=1; these match conv_out for even
    # spatial sizes (the original module silently mis-sizes the Linear for odd
    # sizes, so we just assert consistency instead of "fixing" it).
    h16, w16 = s_h, s_w
    for _ in range(4):
        h16 = (h16 + 2 - 4) // 2 + 1
        w16 = (w16 + 2 - 4) // 2 + 1
    assert (h16, w16) == (s_h16, s_w16), "conv_out sizing diverges for this input"

    ks = jax.random.split(key, 8)
    n = jax.random.normal
    w1 = 0.02 * n(ks[0], (d, 3, 4, 4), jnp.float32)
    w2 = 0.02 * n(ks[1], (2 * d, d, 4, 4), jnp.float32)
    w3 = 0.02 * n(ks[2], (4 * d, 2 * d, 4, 4), jnp.float32)
    w4 = 0.02 * n(ks[3], (8 * d, 4 * d, 4, 4), jnp.float32)
    wl = 0.02 * n(ks[4], (1, s_h16 * s_w16 * 8 * d), jnp.float32)

    # Fold the PyTorch (C, H, W) flatten order into the Linear weight once:
    # store it as an (H*W, C) matrix matching the NHWC activation layout.
    wl_hwc = (wl.reshape(8 * d, s_h16, s_w16)
              .transpose(1, 2, 0)
              .reshape(s_h16 * s_w16, 8 * d))

    return {
        "w1": _prep_conv_weight(w1), "b1": jnp.zeros((1, d), jnp.float32),
        "w2": _prep_conv_weight(w2), "b2": jnp.zeros((1, 2 * d), jnp.float32),
        "g2": 0.1 + 0.02 * n(ks[5], (1, 2 * d), jnp.float32),
        "be2": jnp.zeros((1, 2 * d), jnp.float32),
        "w3": _prep_conv_weight(w3), "b3": jnp.zeros((1, 4 * d), jnp.float32),
        "g3": 0.1 + 0.02 * n(ks[6], (1, 4 * d), jnp.float32),
        "be3": jnp.zeros((1, 4 * d), jnp.float32),
        "w4": _prep_conv_weight(w4), "b4": jnp.zeros((1, 8 * d), jnp.float32),
        "g4": 0.1 + 0.02 * n(ks[7], (1, 8 * d), jnp.float32),
        "be4": jnp.zeros((1, 8 * d), jnp.float32),
        "wl_hwc": wl_hwc, "bl": jnp.zeros((1, 1), jnp.float32),
    }


def discriminator_forward(x, params):
    bsz = x.shape[0]
    h = jnp.transpose(x, (0, 2, 3, 1))              # NCHW -> NHWC, once

    # conv1 + LeakyReLU
    a, ho, wo = im2col_nhwc(h)
    h = conv_lrelu(a, params["w1"], params["b1"])

    # conv2, conv3: fully fused conv + BN (batch stats) + LeakyReLU
    for wk, bk, gk, bek in (("w2", "b2", "g2", "be2"),
                            ("w3", "b3", "g3", "be3")):
        h = h.reshape(bsz, ho, wo, h.shape[-1])
        a, ho, wo = im2col_nhwc(h)
        h = conv_bn_lrelu(a, params[wk], params[bk], params[gk], params[bek])

    # conv4 + BN + LeakyReLU + Linear, all in one kernel
    h = h.reshape(bsz, ho, wo, h.shape[-1])
    a, ho, wo = im2col_nhwc(h)
    hw = ho * wo
    assert params["wl_hwc"].shape[0] == hw
    wl_rows = jnp.tile(params["wl_hwc"], (bsz, 1))          # (B*hw, 8d) f32
    sel = (jnp.arange(bsz)[:, None]
           == (jnp.arange(bsz * hw) // hw)[None, :]).astype(jnp.float32)
    out = conv_bn_lrelu_linear(a, params["w4"], params["b4"], params["g4"],
                               params["be4"], wl_rows, sel, params["bl"])
    return jnp.squeeze(out)


if __name__ == "__main__":
    # Small shapes consistent with the module: d=16, 32x32 RGB input, batch=2.
    D = 16
    INPUT_SHAPE = [32, 32]
    key = jax.random.PRNGKey(0)
    k_x, k_p = jax.random.split(key)

    x = jax.random.normal(k_x, (2, 3, INPUT_SHAPE[0], INPUT_SHAPE[1]),
                          jnp.float32)
    params = init_params(k_p, D, INPUT_SHAPE)

    fwd = jax.jit(discriminator_forward)
    y = fwd(x, params)
    jax.block_until_ready(y)
    assert y.shape == (2,)
    assert bool(jnp.all(jnp.isfinite(y)))
    print("KERNEL_OK")
</pallas_src>

<mosaic_0001>
module attributes {stable_mosaic.version = 11 : i64} {
  func.func @_conv_lrelu_kernel(%arg0: i32, %arg1: memref<128x48xbf16, #tpu.memory_space<vmem>>, %arg2: memref<48x16xbf16, #tpu.memory_space<vmem>>, %arg3: memref<1x16xf32, #tpu.memory_space<vmem>>, %arg4: memref<128x16xbf16, #tpu.memory_space<vmem>>) attributes {dimension_semantics = [#tpu.dimension_semantics<parallel>], iteration_bounds = array<i64: 4>, scalar_prefetch = 0 : i64, scratch_operands = 0 : i64, tpu.core_type = #tpu.core_type<tc>, window_params = [{transform_indices = @transform_0, window_bounds = array<i64: 128, 48>}, {pipeline_mode = #tpu.pipeline_mode<synchronous>, transform_indices = @transform_1, window_bounds = array<i64: 48, 16>}, {pipeline_mode = #tpu.pipeline_mode<synchronous>, transform_indices = @transform_2, window_bounds = array<i64: 1, 16>}, {transform_indices = @transform_3, window_bounds = array<i64: 128, 16>}]} {
    %c0 = arith.constant 0 : index
    %c0_0 = arith.constant 0 : index
    %0 = vector.load %arg1[%c0, %c0_0] : memref<128x48xbf16, #tpu.memory_space<vmem>>, vector<128x48xbf16>
    %c0_1 = arith.constant 0 : index
    %c0_2 = arith.constant 0 : index
    %1 = vector.load %arg2[%c0_1, %c0_2] : memref<48x16xbf16, #tpu.memory_space<vmem>>, vector<48x16xbf16>
    %cst = arith.constant dense<0.000000e+00> : vector<128x16xf32>
    %2 = tpu.matmul %0, %1, %cst {dimension_numbers = #tpu.dot_dimension_numbers<[1], [0], [0], [1], [0, 0, 1, 1], [], []>} : vector<128x48xbf16>, vector<48x16xbf16>, vector<128x16xf32> -> vector<128x16xf32>
    %c0_3 = arith.constant 0 : index
    %c0_4 = arith.constant 0 : index
    %3 = vector.load %arg3[%c0_3, %c0_4] : memref<1x16xf32, #tpu.memory_space<vmem>>, vector<1x16xf32>
    %4 = vector.broadcast %3 : vector<1x16xf32> to vector<128x16xf32>
    %5 = arith.addf %2, %4 : vector<128x16xf32>
    %cst_5 = arith.constant 0.000000e+00 : f32
    %6 = vector.broadcast %cst_5 : f32 to vector<128x16xf32>
    %7 = arith.cmpf ogt, %5, %6 : vector<128x16xf32>
    %cst_6 = arith.constant 2.000000e-01 : f32
    %8 = vector.broadcast %cst_6 : f32 to vector<128x16xf32>
    %9 = arith.mulf %8, %5 : vector<128x16xf32>
    %10 = arith.select %7, %5, %9 : vector<128x16xi1>, vector<128x16xf32>
    %11 = arith.truncf %10 : vector<128x16xf32> to vector<128x16xbf16>
    %c0_7 = arith.constant 0 : index
    %c0_8 = arith.constant 0 : index
    %12 = vector.load %arg4[%c0_7, %c0_8] : memref<128x16xbf16, #tpu.memory_space<vmem>>, vector<128x16xbf16>
    tpu.vector_store %arg4[%c0_7, %c0_8], %11 {strides = array<i32>} : memref<128x16xbf16, #tpu.memory_space<vmem>>, vector<128x16xbf16>,
    return
  }
  func.func @transform_0(%arg0: i32) -> (i32, i32) {
    %c0_i32 = arith.constant 0 : i32
    %c0_i32_0 = arith.constant 0 : i32
    return %arg0, %c0_i32 : i32, i32
  }
  func.func @transform_1(%arg0: i32) -> (i32, i32) {
    %c0_i32 = arith.constant 0 : i32
    %c0_i32_0 = arith.constant 0 : i32
    %c0_i32_1 = arith.constant 0 : i32
    return %c0_i32, %c0_i32_0 : i32, i32
  }
  func.func @transform_2(%arg0: i32) -> (i32, i32) {
    %c0_i32 = arith.constant 0 : i32
    %c0_i32_0 = arith.constant 0 : i32
    %c0_i32_1 = arith.constant 0 : i32
    return %c0_i32, %c0_i32_0 : i32, i32
  }
  func.func @transform_3(%arg0: i32) -> (i32, i32) {
    %c0_i32 = arith.constant 0 : i32
    %c0_i32_0 = arith.constant 0 : i32
    return %arg0, %c0_i32 : i32, i32
  }
}

module attributes {stable_mosaic.version = 11 : i64} {
  func.func @_conv_bn_lrelu_kernel(%arg0: memref<128x256xbf16, #tpu.memory_space<vmem>>, %arg1: memref<256x32xbf16, #tpu.memory_space<vmem>>, %arg2: memref<1x32xf32, #tpu.memory_space<vmem>>, %arg3: memref<1x32xf32, #tpu.memory_space<vmem>>, %arg4: memref<1x32xf32, #tpu.memory_space<vmem>>, %arg5: memref<128x32xbf16, #tpu.memory_space<vmem>>) attributes {dimension_semantics = [], scalar_prefetch = 0 : i64, scratch_operands = 0 : i64, tpu.core_type = #tpu.core_type<tc>} {
    %c0 = arith.constant 0 : index
    %c0_0 = arith.constant 0 : index
    %0 = vector.load %arg0[%c0, %c0_0] : memref<128x256xbf16, #tpu.memory_space<vmem>>, vector<128x256xbf16>
    %c0_1 = arith.constant 0 : index
    %c0_2 = arith.constant 0 : index
    %1 = vector.load %arg1[%c0_1, %c0_2] : memref<256x32xbf16, #tpu.memory_space<vmem>>, vector<256x32xbf16>
    %cst = arith.constant dense<0.000000e+00> : vector<128x32xf32>
    %2 = tpu.matmul %0, %1, %cst {dimension_numbers = #tpu.dot_dimension_numbers<[1], [0], [0], [1], [0, 0, 1, 1], [], []>} : vector<128x256xbf16>, vector<256x32xbf16>, vector<128x32xf32> -> vector<128x32xf32>
    %c0_3 = arith.constant 0 : index
    %c0_4 = arith.constant 0 : index
    %3 = vector.load %arg2[%c0_3, %c0_4] : memref<1x32xf32, #tpu.memory_space<vmem>>, vector<1x32xf32>
    %4 = vector.broadcast %3 : vector<1x32xf32> to vector<128x32xf32>
    %5 = arith.addf %2, %4 : vector<128x32xf32>
    %cst_5 = arith.constant dense<0.000000e+00> : vector<32xf32>
    %6 = vector.multi_reduction <add>, %5, %cst_5 [0] : vector<128x32xf32> to vector<32xf32>
    %7 = vector.shape_cast %6 : vector<32xf32> to vector<1x32xf32>
    %cst_6 = arith.constant 1.280000e+02 : f32
    %8 = vector.broadcast %cst_6 : f32 to vector<1x32xf32>
    %9 = arith.divf %7, %8 : vector<1x32xf32>
    %10 = vector.broadcast %9 : vector<1x32xf32> to vector<128x32xf32>
    %11 = arith.subf %5, %10 : vector<128x32xf32>
    %12 = arith.mulf %11, %11 : vector<128x32xf32>
    %cst_7 = arith.constant dense<0.000000e+00> : vector<32xf32>
    %13 = vector.multi_reduction <add>, %12, %cst_7 [0] : vector<128x32xf32> to vector<32xf32>
    %14 = vector.shape_cast %13 : vector<32xf32> to vector<1x32xf32>
    %cst_8 = arith.constant 1.280000e+02 : f32
    %15 = vector.broadcast %cst_8 : f32 to vector<1x32xf32>
    %16 = arith.divf %14, %15 : vector<1x32xf32>
    %c0_9 = arith.constant 0 : index
    %c0_10 = arith.constant 0 : index
    %17 = vector.load %arg3[%c0_9, %c0_10] : memref<1x32xf32, #tpu.memory_space<vmem>>, vector<1x32xf32>
    %cst_11 = arith.constant 9.99999974E-6 : f32
    %18 = vector.broadcast %cst_11 : f32 to vector<1x32xf32>
    %19 = arith.addf %16, %18 : vector<1x32xf32>
    %20 = math.rsqrt %19 : vector<1x32xf32>
    %21 = arith.mulf %17, %20 : vector<1x32xf32>
    %22 = vector.broadcast %21 : vector<1x32xf32> to vector<128x32xf32>
    %23 = arith.mulf %11, %22 : vector<128x32xf32>
    %c0_12 = arith.constant 0 : index
    %c0_13 = arith.constant 0 : index
    %24 = vector.load %arg4[%c0_12, %c0_13] : memref<1x32xf32, #tpu.memory_space<vmem>>, vector<1x32xf32>
    %25 = vector.broadcast %24 : vector<1x32xf32> to vector<128x32xf32>
    %26 = arith.addf %23, %25 : vector<128x32xf32>
    %cst_14 = arith.constant 0.000000e+00 : f32
    %27 = vector.broadcast %cst_14 : f32 to vector<128x32xf32>
    %28 = arith.cmpf ogt, %26, %27 : vector<128x32xf32>
    %cst_15 = arith.constant 2.000000e-01 : f32
    %29 = vector.broadcast %cst_15 : f32 to vector<128x32xf32>
    %30 = arith.mulf %29, %26 : vector<128x32xf32>
    %31 = arith.select %28, %26, %30 : vector<128x32xi1>, vector<128x32xf32>
    %32 = arith.truncf %31 : vector<128x32xf32> to vector<128x32xbf16>
    %c0_16 = arith.constant 0 : index
    %c0_17 = arith.constant 0 : index
    %33 = vector.load %arg5[%c0_16, %c0_17] : memref<128x32xbf16, #tpu.memory_space<vmem>>, vector<128x32xbf16>
    tpu.vector_store %arg5[%c0_16, %c0_17], %32 {strides = array<i32>} : memref<128x32xbf16, #tpu.memory_space<vmem>>, vector<128x32xbf16>,
    return
  }
}

module attributes {stable_mosaic.version = 11 : i64} {
  func.func @_conv_bn_lrelu_kernel(%arg0: memref<32x512xbf16, #tpu.memory_space<vmem>>, %arg1: memref<512x64xbf16, #tpu.memory_space<vmem>>, %arg2: memref<1x64xf32, #tpu.memory_space<vmem>>, %arg3: memref<1x64xf32, #tpu.memory_space<vmem>>, %arg4: memref<1x64xf32, #tpu.memory_space<vmem>>, %arg5: memref<32x64xbf16, #tpu.memory_space<vmem>>) attributes {dimension_semantics = [], scalar_prefetch = 0 : i64, scratch_operands = 0 : i64, tpu.core_type = #tpu.core_type<tc>} {
    %c0 = arith.constant 0 : index
    %c0_0 = arith.constant 0 : index
    %0 = vector.load %arg0[%c0, %c0_0] : memref<32x512xbf16, #tpu.memory_space<vmem>>, vector<32x512xbf16>
    %c0_1 = arith.constant 0 : index
    %c0_2 = arith.constant 0 : index
    %1 = vector.load %arg1[%c0_1, %c0_2] : memref<512x64xbf16, #tpu.memory_space<vmem>>, vector<512x64xbf16>
    %cst = arith.constant dense<0.000000e+00> : vector<32x64xf32>
    %2 = tpu.matmul %0, %1, %cst {dimension_numbers = #tpu.dot_dimension_numbers<[1], [0], [0], [1], [0, 0, 1, 1], [], []>} : vector<32x512xbf16>, vector<512x64xbf16>, vector<32x64xf32> -> vector<32x64xf32>
    %c0_3 = arith.constant 0 : index
    %c0_4 = arith.constant 0 : index
    %3 = vector.load %arg2[%c0_3, %c0_4] : memref<1x64xf32, #tpu.memory_space<vmem>>, vector<1x64xf32>
    %4 = vector.broadcast %3 : vector<1x64xf32> to vector<32x64xf32>
    %5 = arith.addf %2, %4 : vector<32x64xf32>
    %cst_5 = arith.constant dense<0.000000e+00> : vector<64xf32>
    %6 = vector.multi_reduction <add>, %5, %cst_5 [0] : vector<32x64xf32> to vector<64xf32>
    %7 = vector.shape_cast %6 : vector<64xf32> to vector<1x64xf32>
    %cst_6 = arith.constant 3.200000e+01 : f32
    %8 = vector.broadcast %cst_6 : f32 to vector<1x64xf32>
    %9 = arith.divf %7, %8 : vector<1x64xf32>
    %10 = vector.broadcast %9 : vector<1x64xf32> to vector<32x64xf32>
    %11 = arith.subf %5, %10 : vector<32x64xf32>
    %12 = arith.mulf %11, %11 : vector<32x64xf32>
    %cst_7 = arith.constant dense<0.000000e+00> : vector<64xf32>
    %13 = vector.multi_reduction <add>, %12, %cst_7 [0] : vector<32x64xf32> to vector<64xf32>
    %14 = vector.shape_cast %13 : vector<64xf32> to vector<1x64xf32>
    %cst_8 = arith.constant 3.200000e+01 : f32
    %15 = vector.broadcast %cst_8 : f32 to vector<1x64xf32>
    %16 = arith.divf %14, %15 : vector<1x64xf32>
    %c0_9 = arith.constant 0 : index
    %c0_10 = arith.constant 0 : index
    %17 = vector.load %arg3[%c0_9, %c0_10] : memref<1x64xf32, #tpu.memory_space<vmem>>, vector<1x64xf32>
    %cst_11 = arith.constant 9.99999974E-6 : f32
    %18 = vector.broadcast %cst_11 : f32 to vector<1x64xf32>
    %19 = arith.addf %16, %18 : vector<1x64xf32>
    %20 = math.rsqrt %19 : vector<1x64xf32>
    %21 = arith.mulf %17, %20 : vector<1x64xf32>
    %22 = vector.broadcast %21 : vector<1x64xf32> to vector<32x64xf32>
    %23 = arith.mulf %11, %22 : vector<32x64xf32>
    %c0_12 = arith.constant 0 : index
    %c0_13 = arith.constant 0 : index
    %24 = vector.load %arg4[%c0_12, %c0_13] : memref<1x64xf32, #tpu.memory_space<vmem>>, vector<1x64xf32>
    %25 = vector.broadcast %24 : vector<1x64xf32> to vector<32x64xf32>
    %26 = arith.addf %23, %25 : vector<32x64xf32>
    %cst_14 = arith.constant 0.000000e+00 : f32
    %27 = vector.broadcast %cst_14 : f32 to vector<32x64xf32>
    %28 = arith.cmpf ogt, %26, %27 : vector<32x64xf32>
    %cst_15 = arith.constant 2.000000e-01 : f32
    %29 = vector.broadcast %cst_15 : f32 to vector<32x64xf32>
    %30 = arith.mulf %29, %26 : vector<32x64xf32>
    %31 = arith.select %28, %26, %30 : vector<32x64xi1>, vector<32x64xf32>
    %32 = arith.truncf %31 : vector<32x64xf32> to vector<32x64xbf16>
    %c0_16 = arith.constant 0 : index
    %c0_17 = arith.constant 0 : index
    %33 = vector.load %arg5[%c0_16, %c0_17] : memref<32x64xbf16, #tpu.memory_space<vmem>>, vector<32x64xbf16>
    tpu.vector_store %arg5[%c0_16, %c0_17], %32 {strides = array<i32>} : memref<32x64xbf16, #tpu.memory_space<vmem>>, vector<32x64xbf16>,
    return
  }
}

module attributes {stable_mosaic.version = 11 : i64} {
  func.func @_conv_bn_lrelu_linear_kernel(%arg0: memref<8x1024xbf16, #tpu.memory_space<vmem>>, %arg1: memref<1024x128xbf16, #tpu.memory_space<vmem>>, %arg2: memref<1x128xf32, #tpu.memory_space<vmem>>, %arg3: memref<1x128xf32, #tpu.memory_space<vmem>>, %arg4: memref<1x128xf32, #tpu.memory_space<vmem>>, %arg5: memref<8x128xf32, #tpu.memory_space<vmem>>, %arg6: memref<2x8xf32, #tpu.memory_space<vmem>>, %arg7: memref<1x1xf32, #tpu.memory_space<vmem>>, %arg8: memref<2x1xf32, #tpu.memory_space<vmem>>) attributes {dimension_semantics = [], scalar_prefetch = 0 : i64, scratch_operands = 0 : i64, tpu.core_type = #tpu.core_type<tc>} {
    %c0 = arith.constant 0 : index
    %c0_0 = arith.constant 0 : index
    %0 = vector.load %arg0[%c0, %c0_0] : memref<8x1024xbf16, #tpu.memory_space<vmem>>, vector<8x1024xbf16>
    %c0_1 = arith.constant 0 : index
    %c0_2 = arith.constant 0 : index
    %1 = vector.load %arg1[%c0_1, %c0_2] : memref<1024x128xbf16, #tpu.memory_space<vmem>>, vector<1024x128xbf16>
    %cst = arith.constant dense<0.000000e+00> : vector<8x128xf32>
    %2 = tpu.matmul %0, %1, %cst {dimension_numbers = #tpu.dot_dimension_numbers<[1], [0], [0], [1], [0, 0, 1, 1], [], []>} : vector<8x1024xbf16>, vector<1024x128xbf16>, vector<8x128xf32> -> vector<8x128xf32>
    %c0_3 = arith.constant 0 : index
    %c0_4 = arith.constant 0 : index
    %3 = vector.load %arg2[%c0_3, %c0_4] : memref<1x128xf32, #tpu.memory_space<vmem>>, vector<1x128xf32>
    %4 = vector.broadcast %3 : vector<1x128xf32> to vector<8x128xf32>
    %5 = arith.addf %2, %4 : vector<8x128xf32>
    %cst_5 = arith.constant dense<0.000000e+00> : vector<128xf32>
    %6 = vector.multi_reduction <add>, %5, %cst_5 [0] : vector<8x128xf32> to vector<128xf32>
    %7 = vector.shape_cast %6 : vector<128xf32> to vector<1x128xf32>
    %cst_6 = arith.constant 8.000000e+00 : f32
    %8 = vector.broadcast %cst_6 : f32 to vector<1x128xf32>
    %9 = arith.divf %7, %8 : vector<1x128xf32>
    %10 = vector.broadcast %9 : vector<1x128xf32> to vector<8x128xf32>
    %11 = arith.subf %5, %10 : vector<8x128xf32>
    %12 = arith.mulf %11, %11 : vector<8x128xf32>
    %cst_7 = arith.constant dense<0.000000e+00> : vector<128xf32>
    %13 = vector.multi_reduction <add>, %12, %cst_7 [0] : vector<8x128xf32> to vector<128xf32>
    %14 = vector.shape_cast %13 : vector<128xf32> to vector<1x128xf32>
    %cst_8 = arith.constant 8.000000e+00 : f32
    %15 = vector.broadcast %cst_8 : f32 to vector<1x128xf32>
    %16 = arith.divf %14, %15 : vector<1x128xf32>
    %c0_9 = arith.constant 0 : index
    %c0_10 = arith.constant 0 : index
    %17 = vector.load %arg3[%c0_9, %c0_10] : memref<1x128xf32, #tpu.memory_space<vmem>>, vector<1x128xf32>
    %cst_11 = arith.constant 9.99999974E-6 : f32
    %18 = vector.broadcast %cst_11 : f32 to vector<1x128xf32>
    %19 = arith.addf %16, %18 : vector<1x128xf32>
    %20 = math.rsqrt %19 : vector<1x128xf32>
    %21 = arith.mulf %17, %20 : vector<1x128xf32>
    %22 = vector.broadcast %21 : vector<1x128xf32> to vector<8x128xf32>
    %23 = arith.mulf %11, %22 : vector<8x128xf32>
    %c0_12 = arith.constant 0 : index
    %c0_13 = arith.constant 0 : index
    %24 = vector.load %arg4[%c0_12, %c0_13] : memref<1x128xf32, #tpu.memory_space<vmem>>, vector<1x128xf32>
    %25 = vector.broadcast %24 : vector<1x128xf32> to vector<8x128xf32>
    %26 = arith.addf %23, %25 : vector<8x128xf32>
    %cst_14 = arith.constant 0.000000e+00 : f32
    %27 = vector.broadcast %cst_14 : f32 to vector<8x128xf32>
    %28 = arith.cmpf ogt, %26, %27 : vector<8x128xf32>
    %cst_15 = arith.constant 2.000000e-01 : f32
    %29 = vector.broadcast %cst_15 : f32 to vector<8x128xf32>
    %30 = arith.mulf %29, %26 : vector<8x128xf32>
    %31 = arith.select %28, %26, %30 : vector<8x128xi1>, vector<8x128xf32>
    %c0_16 = arith.constant 0 : index
    %c0_17 = arith.constant 0 : index
    %32 = vector.load %arg5[%c0_16, %c0_17] : memref<8x128xf32, #tpu.memory_space<vmem>>, vector<8x128xf32>
    %33 = arith.mulf %31, %32 : vector<8x128xf32>
    %c0_18 = arith.constant 0 : index
    %c0_19 = arith.constant 0 : index
    %34 = vector.load %arg6[%c0_18, %c0_19] : memref<2x8xf32, #tpu.memory_space<vmem>>, vector<2x8xf32>
    %cst_20 = arith.constant dense<0.000000e+00> : vector<2x128xf32>
    %35 = tpu.matmul %34, %33, %cst_20 {dimension_numbers = #tpu.dot_dimension_numbers<[1], [0], [0], [1], [0, 0, 1, 1], [], []>} : vector<2x8xf32>, vector<8x128xf32>, vector<2x128xf32> -> vector<2x128xf32>
    %cst_21 = arith.constant dense<0.000000e+00> : vector<2xf32>
    %36 = vector.multi_reduction <add>, %35, %cst_21 [1] : vector<2x128xf32> to vector<2xf32>
    %37 = vector.shape_cast %36 : vector<2xf32> to vector<2x1xf32>
    %c0_22 = arith.constant 0 : index
    %c0_23 = arith.constant 0 : index
    %38 = vector.load %arg7[%c0_22, %c0_23] : memref<1x1xf32, #tpu.memory_space<vmem>>, vector<1x1xf32>
    %39 = vector.broadcast %38 : vector<1x1xf32> to vector<2x1xf32>
    %40 = arith.addf %37, %39 : vector<2x1xf32>
    %c0_24 = arith.constant 0 : index
    %c0_25 = arith.constant 0 : index
    %41 = vector.load %arg8[%c0_24, %c0_25] : memref<2x1xf32, #tpu.memory_space<vmem>>, vector<2x1xf32>
    tpu.vector_store %arg8[%c0_24, %c0_25], %40 {strides = array<i32>} : memref<2x1xf32, #tpu.memory_space<vmem>>, vector<2x1xf32>,
    return
  }
}

</mosaic_0001>

<llo_original>
// kernel: discriminator_forward.4
$region0: #{discriminator_forward.4}
  #allocation0 [shape = 'u32[]', space=smem, size = 0x4, offset = 0x4, fixed_abs, tag = 'smem constant byte address 0x4 - core index']
  #allocation1 [shape = 'u32[144,128]{1,0:T(1,128)}', space=vmem, size = 0x12000, scoped, tag = 'internal scratch']
  %s0 = inlined_call_operand.vmem [shape: bf16[512,48], index: 0, kind: input, shape index: {}]
  %s1 = inlined_call_operand.vmem [shape: bf16[48,16], index: 1, kind: input, shape index: {}]
  %s2 = inlined_call_operand.vmem [shape: f32[1,16], index: 2, kind: input, shape index: {}]
  %s3 = inlined_call_operand.vmem [shape: bf16[512,16], index: 3, kind: output, shape index: {}]
  %s4 = sld [smem:[#allocation0]]
  $region45: #{discriminator_forward.4} parent=0
    _
  %s6 = ssub.s32 1, %s4
  %s7 = scalar_select 0, %s6, %s4
  loop: start=0, step=1, limit=6
  $region2: #{discriminator_forward.4} parent=0 // loop_pre_header
    _
  $region3: #{discriminator_forward.4} parent=0 // loop_header
    %s9 = sphi 0, %s13
    %p10 = scmp.ge.s32.totalorder %s9, 6
    %s19 = sphi 0, %s21
    %s22 = sphi 0, %s19
    %s23 = sphi 0, %s22
    %s39 = sphi 0, %s23
    %s43 = sphi 0, %s43
    %s45 = sphi 0, %s43
    %s46 = sphi 0, %s45
    %s60 = sphi 0, %s46
    %s64 = sphi 0, %s64
    %s66 = sphi 0, %s64
    %s67 = sphi 0, %s66
    %s81 = sphi 0, %s67
    %s87 = sphi 0, %s89
    %s90 = sphi 0, %s87
    %s91 = sphi 0, %s90
    %s107 = sphi 0, %s91
  $region4: #{discriminator_forward.4} parent=0 // loop_header_branch
    %12 = sbr.rel (%p10) target = $region8
  $region5: #{discriminator_forward.4} parent=0 // loop_body
    %s14 = ssub.s32 %s9, 1
    %s15 = ssub.s32 %s9, 2
    %s16 = sadd.s32 %s9, 1
    %s17 = ssub.s32 %s9, %s16
    %p18 = scmp.eq.s32.totalorder %s17, 0
    %s20 = sadd.s32 %s19, 1
    %s21 = scalar_select %p18, %s19, %s20
    %p24 = pneg %p18
    %p25 = scmp.eq.s32.totalorder %s9, 3
    %p26 = por %p24, %p25
    %p27 = scmp.ne.s32.totalorder %s19, %s22
    %p28 = scmp.eq.s32.totalorder %s9, 0
    %p29 = por %p27, %p28
    %p30 = scmp.ne.s32.totalorder %s19, %s22
    %p31 = scmp.eq.s32.totalorder %s14, 3
    %p32 = por %p30, %p31
    %p33 = scmp.ne.s32.totalorder %s22, %s23
    %p34 = scmp.eq.s32.totalorder %s14, 0
    %p35 = por %p33, %p34
    %p36 = scmp.ne.s32.totalorder %s22, %s23
    %p37 = scmp.eq.s32.totalorder %s15, 3
    %p38 = por %p36, %p37
    %p40 = scmp.ne.s32.totalorder %s23, %s39
    %p41 = scmp.eq.s32.totalorder %s15, 0
    %p42 = por %p40, %p41
    %s44 = sadd.s32 %s43, 1
    %p47 = scmp.eq.s32.totalorder %s9, 3
    %p48 = scmp.ne.s32.totalorder %s43, %s45
    %p49 = scmp.eq.s32.totalorder %s9, 0
    %p50 = por %p48, %p49
    %p51 = scmp.ne.s32.totalorder %s43, %s45
    %p52 = scmp.eq.s32.totalorder %s14, 3
    %p53 = por %p51, %p52
    %p54 = scmp.ne.s32.totalorder %s45, %s46
    %p55 = scmp.eq.s32.totalorder %s14, 0
    %p56 = por %p54, %p55
    %p57 = scmp.ne.s32.totalorder %s45, %s46
    %p58 = scmp.eq.s32.totalorder %s15, 3
    %p59 = por %p57, %p58
    %p61 = scmp.ne.s32.totalorder %s46, %s60
    %p62 = scmp.eq.s32.totalorder %s15, 0
    %p63 = por %p61, %p62
    %s65 = sadd.s32 %s64, 1
    %p68 = scmp.eq.s32.totalorder %s9, 3
    %p69 = scmp.ne.s32.totalorder %s64, %s66
    %p70 = scmp.eq.s32.totalorder %s9, 0
    %p71 = por %p69, %p70
    %p72 = scmp.ne.s32.totalorder %s64, %s66
    %p73 = scmp.eq.s32.totalorder %s14, 3
    %p74 = por %p72, %p73
    %p75 = scmp.ne.s32.totalorder %s66, %s67
    %p76 = scmp.eq.s32.totalorder %s14, 0
    %p77 = por %p75, %p76
    %p78 = scmp.ne.s32.totalorder %s66, %s67
    %p79 = scmp.eq.s32.totalorder %s15, 3
    %p80 = por %p78, %p79
    %p82 = scmp.ne.s32.totalorder %s67, %s81
    %p83 = scmp.eq.s32.totalorder %s15, 0
    %p84 = por %p82, %p83
    %s85 = ssub.s32 %s9, %s16
    %p86 = scmp.eq.s32.totalorder %s85, 0
    %s88 = sadd.s32 %s87, 1
    %s89 = scalar_select %p86, %s87, %s88
    %p92 = pneg %p86
    %p93 = scmp.eq.s32.totalorder %s9, 3
    %p94 = por %p92, %p93
    %p95 = scmp.ne.s32.totalorder %s87, %s90
    %p96 = scmp.eq.s32.totalorder %s9, 0
    %p97 = por %p95, %p96
    %p98 = scmp.ne.s32.totalorder %s87, %s90
    %p99 = scmp.eq.s32.totalorder %s14, 3
    %p100 = por %p98, %p99
    %p101 = scmp.ne.s32.totalorder %s90, %s91
    %p102 = scmp.eq.s32.totalorder %s14, 0
    %p103 = por %p101, %p102
    %p104 = scmp.ne.s32.totalorder %s90, %s91
    %p105 = scmp.eq.s32.totalorder %s15, 3
    %p106 = por %p104, %p105
    %p108 = scmp.ne.s32.totalorder %s91, %s107
    %p109 = scmp.eq.s32.totalorder %s15, 0
    %p110 = por %p108, %p109
    %p111 = scmp.le.s32.totalorder 1, %s9
    %p112 = scmp.lt.s32.totalorder %s9, 5
    %p113 = pnand %p111, %p112
    %p114 = pneg %p113
    // Predicated region
    $region9: #{discriminator_forward.4} parent=5 // pred_check
      _
    $region10: #{discriminator_forward.4} parent=5 // pred_check_branch
      %116 = sbr.rel (%p113) target = $region12
    $region11: #{discriminator_forward.4} parent=5 // pred_region
      %s117 = ssub.s32 %s9, 1
      // Predicated region
      $region13: #{discriminator_forward.4} parent=11 // pred_check
        %p118 = pneg %p56
      $region14: #{discriminator_forward.4} parent=11 // pred_check_branch
        %120 = sbr.rel (%p118) target = $region16
      $region15: #{discriminator_forward.4} parent=11 // pred_region
        _
      $region16: #{discriminator_forward.4} parent=11 // pred_fallthru
        _
      // Predicated region
      $region17: #{discriminator_forward.4} parent=11 // pred_check
        %p121 = pneg %p77
      $region18: #{discriminator_forward.4} parent=11 // pred_check_branch
        %123 = sbr.rel (%p121) target = $region20
      $region19: #{discriminator_forward.4} parent=11 // pred_region
        _
      $region20: #{discriminator_forward.4} parent=11 // pred_fallthru
        _
    $region12: #{discriminator_forward.4} parent=5 // pred_fallthru
      _
    %p124 = scmp.lt.s32.totalorder %s9, 4
    // Predicated region
    $region21: #{discriminator_forward.4} parent=5 // pred_check
      %p125 = pneg %p124
    $region22: #{discriminator_forward.4} parent=5 // pred_check_branch
      %127 = sbr.rel (%p125) target = $region24
    $region23: #{discriminator_forward.4} parent=5 // pred_region
      // Predicated region
      $region25: #{discriminator_forward.4} parent=23 // pred_check
        %p128 = pneg %p29
      $region26: #{discriminator_forward.4} parent=23 // pred_check_branch
        %130 = sbr.rel (%p128) target = $region28
      $region27: #{discriminator_forward.4} parent=23 // pred_region
        %s131 = smul.u32 16, %s9
        %p132 = scmp.lt.s32.totalorder %s131, 63
        %s133 = scalar_select %p132, %s131, 63
        %s134 = smul.addr %s133, 4
        %s135 = scalar_lea.vmem %s0, %s134
        %s136 = smul.u32 16, %s9
      $region28: #{discriminator_forward.4} parent=23 // pred_fallthru
        _
    $region24: #{discriminator_forward.4} parent=5 // pred_fallthru
      _
    %p137 = scmp.le.s32.totalorder 1, %s9
    %p138 = scmp.lt.s32.totalorder %s9, 5
    %p139 = pnand %p137, %p138
    %p140 = pneg %p139
    // Predicated region
    $region29: #{discriminator_forward.4} parent=5 // pred_check
      _
    $region30: #{discriminator_forward.4} parent=5 // pred_check_branch
      %142 = sbr.rel (%p139) target = $region32
    $region31: #{discriminator_forward.4} parent=5 // pred_region
      %s143 = ssub.s32 %s9, 1
      %s144 = smul.u32 16, %s14
      %p145 = scmp.lt.s32.totalorder %s144, 63
      %s146 = scalar_select %p145, %s144, 63
      %s147 = smul.addr %s146, 4
      %s148 = scalar_lea.vmem %s0, %s147
      %p149 = pneg %p35
      %p150 = pneg %p32
      %p151 = pneg %p56
      %p152 = pneg %p53
      %p153 = pneg %p77
      %p154 = pneg %p74
      %p155 = pneg %p103
      %p156 = pneg %p100
      %s157 = smul.u32 16, %s14
      %p158 = scmp.lt.s32.totalorder %s157, 63
      %s159 = scalar_select %p158, %s157, 63
      %s160 = smul.addr %s159, 4
      %s161 = scalar_lea.vmem %s3, %s160
      %s162 = smul.u32 16, %s14
      %p163 = scmp.lt.s32.totalorder %s162, 63
      %s164 = scalar_select %p163, %s162, 63
      %s165 = smul.addr %s164, 4
      %s166 = scalar_lea.vmem %s0, %s165
      %s167 = smul.u32 16, %s14
      %s168 = smul.u32 16, %s14
      %p169 = scmp.lt.s32.totalorder %s168, 63
      %s170 = scalar_select %p169, %s168, 63
      %s171 = smul.addr %s170, 4
      %s172 = scalar_lea.vmem %s3, %s171
      %s173 = smul.u32 16, %s14
      %v175 = vld [vmem:[%s166] sm:$0xf]
      %v176 = vld [vmem:[%s166 + $0x4] sm:$0xf]
      %v177 = vld [vmem:[%s166 + $0x8] sm:$0xf]
      %v178 = vld [vmem:[%s166 + $0xc] sm:$0xf]
      %v179 = vld [vmem:[%s166 + $0x10] sm:$0xf]
      %v180 = vld [vmem:[%s166 + $0x14] sm:$0xf]
      %v181 = vld [vmem:[%s166 + $0x18] sm:$0xf]
      %v182 = vld [vmem:[%s166 + $0x1c] sm:$0xf]
      %v183 = vld [vmem:[%s166 + $0x20] sm:$0xf]
      %v184 = vld [vmem:[%s166 + $0x24] sm:$0xf]
      %v185 = vld [vmem:[%s166 + $0x28] sm:$0xf]
      %v186 = vld [vmem:[%s166 + $0x2c] sm:$0xf]
      %v187 = vld [vmem:[%s166 + $0x30] sm:$0xf]
      %v188 = vld [vmem:[%s166 + $0x34] sm:$0xf]
      %v189 = vld [vmem:[%s166 + $0x38] sm:$0xf]
      %v190 = vld [vmem:[%s166 + $0x3c] sm:$0xf]
      %v191 = vld [vmem:[%s1] sm:$0xf]
      %v192 = vld [vmem:[%s1 + $0x4] sm:$0xf]
      %v193 = vld [vmem:[%s1 + $0x8] sm:$0xf]
      %v194 = vld [vmem:[%s1 + $0xc] sm:$0xf]
      %v195 = vld [vmem:[%s1 + $0x10] sm:$0xf]
      %v196 = vld [vmem:[%s1 + $0x14] sm:$0xf]
      %v197 = vld [vmem:[%s2] sm:$0x1]
      %v199 = vlaneseq
      %v200 = vshrl.u32 %v199, 7
      %v201 = vsub.s32 0, %v200
      %v202 = vrot.slane %v197, %v201
      %v220 = vunpack.c.l.b16 %v175
      %v221 = vunpack.c.l.b16 %v176
      %v222 = vunpack.c.l.b16 %v177
      %v223 = vunpack.c.l.b16 %v178
      %v224 = vunpack.c.l.b16 %v179
      %v225 = vunpack.c.l.b16 %v180
      %v226 = vunpack.c.l.b16 %v181
      %v227 = vunpack.c.l.b16 %v182
      %v228 = vunpack.c.l.b16 %v183
      %v229 = vunpack.c.l.b16 %v184
      %v230 = vunpack.c.l.b16 %v185
      %v231 = vunpack.c.l.b16 %v186
      %v232 = vunpack.c.l.b16 %v187
      %v233 = vunpack.c.l.b16 %v188
      %v234 = vunpack.c.l.b16 %v189
      %v235 = vunpack.c.l.b16 %v190
      %v236 = vpack.c.b16 %v221, %v220
      %v237 = vpack.c.b16 %v223, %v222
      %v238 = vpack.c.b16 %v225, %v224
      %v239 = vpack.c.b16 %v227, %v226
      %v240 = vpack.c.b16 %v229, %v228
      %v241 = vpack.c.b16 %v231, %v230
      %v242 = vpack.c.b16 %v233, %v232
      %v243 = vpack.c.b16 %v235, %v234
      %v250 = vunpack.c.l.b16 %v191
      %v251 = vunpack.c.l.b16 %v192
      %v252 = vunpack.c.l.b16 %v193
      %v253 = vunpack.c.l.b16 %v194
      %v254 = vunpack.c.l.b16 %v195
      %v255 = vunpack.c.l.b16 %v196
      %v256 = vpack.c.b16 %v251, %v250
      %v257 = vpack.c.b16 %v253, %v252
      %v258 = vpack.c.b16 %v255, %v254
      %vm262 = vcmask 392192
      %v264 = vsel %vm262, %v236, 0
      %v267 = vsel %vm262, %v237, 0
      %v270 = vsel %vm262, %v238, 0
      %v273 = vsel %vm262, %v239, 0
      %v276 = vsel %vm262, %v240, 0
      %v279 = vsel %vm262, %v241, 0
      %v282 = vsel %vm262, %v242, 0
      %v285 = vsel %vm262, %v243, 0
      %287 = vmatprep.subr.bf16.mxu0 0
      %288 = vmatpush1.bf16.msra.mxu0 %v256
      %289 = vmatprep.subr.bf16.mxu0 0
      %290 = vmatpush1.bf16.msra.mxu0 %v257
      %291 = vmatprep.subr.bf16.mxu0 0
      %292 = vmatpush1.bf16.msra.mxu0 %v258
      %293 = vmatprep.subr.bf16.mxu0 0
      %294 = vmatpush1.bf16.msra.mxu0 0
      %295 = vmatprep.subr.bf16.mxu0 0
      %296 = vmatpush1.bf16.msra.mxu0 0
      %297 = vmatprep.subr.bf16.mxu0 0
      %298 = vmatpush1.bf16.msra.mxu0 0
      %299 = vmatprep.subr.bf16.mxu0 0
      %300 = vmatpush1.bf16.msra.mxu0 0
      %301 = vmatprep.subr.bf16.mxu0 0
      %302 = vmatpush1.bf16.msra.mxu0 0
      %303 = vmatprep.subr.bf16.mxu0 0
      %304 = vmatpush1.bf16.msra.mxu0 0
      %305 = vmatprep.subr.bf16.mxu0 0
      %306 = vmatpush1.bf16.msra.mxu0 0
      %307 = vmatprep.subr.bf16.mxu0 0
      %308 = vmatpush1.bf16.msra.mxu0 0
      %309 = vmatprep.subr.bf16.mxu0 0
      %310 = vmatpush1.bf16.msra.mxu0 0
      %311 = vmatprep.subr.bf16.mxu0 0
      %312 = vmatpush1.bf16.msra.mxu0 0
      %313 = vmatprep.subr.bf16.mxu0 0
      %314 = vmatpush1.bf16.msra.mxu0 0
      %315 = vmatprep.subr.bf16.mxu0 0
      %316 = vmatpush1.bf16.msra.mxu0 0
      %317 = vmatprep.subr.bf16.mxu0 0
      %318 = vmatpush1.bf16.msra.mxu0 0
      %319 = vmatprep.mubr.bf16.mxu0 0
      %320 = vmatmul.mubr.bf16.gmra.mrb[0].mxu0 %v264
      %v321 = vpop.f32.mrb[0].mxu0
      %v322 = vadd.f32 %v202, %v321
      %v323 = vpop.f32.mrb[0].mxu0
      %v324 = vpop.f32.mrb[0].mxu0
      %v325 = vadd.f32 %v202, %v324
      %v326 = vpop.f32.mrb[0].mxu0
      %327 = vmatprep.mubr.bf16.mxu0 0
      %328 = vmatmul.mubr.bf16.gmra.mrb[0].mxu0 %v267
      %v329 = vpop.f32.mrb[0].mxu0
      %v330 = vadd.f32 %v202, %v329
      %v331 = vpop.f32.mrb[0].mxu0
      %v332 = vpop.f32.mrb[0].mxu0
      %v333 = vadd.f32 %v202, %v332
      %v334 = vpop.f32.mrb[0].mxu0
      %335 = vmatprep.mubr.bf16.mxu0 0
      %336 = vmatmul.mubr.bf16.gmra.mrb[0].mxu0 %v270
      %v337 = vpop.f32.mrb[0].mxu0
      %v338 = vadd.f32 %v202, %v337
      %v339 = vpop.f32.mrb[0].mxu0
      %v340 = vpop.f32.mrb[0].mxu0
      %v341 = vadd.f32 %v202, %v340
      %v342 = vpop.f32.mrb[0].mxu0
      %343 = vmatprep.mubr.bf16.mxu0 0
      %344 = vmatmul.mubr.bf16.gmra.mrb[0].mxu0 %v273
      %v345 = vpop.f32.mrb[0].mxu0
      %v346 = vadd.f32 %v202, %v345
      %v347 = vpop.f32.mrb[0].mxu0
      %v348 = vpop.f32.mrb[0].mxu0
      %v349 = vadd.f32 %v202, %v348
      %v350 = vpop.f32.mrb[0].mxu0
      %351 = vmatprep.mubr.bf16.mxu0 0
      %352 = vmatmul.mubr.bf16.gmra.mrb[0].mxu0 %v276
      %v353 = vpop.f32.mrb[0].mxu0
      %v354 = vadd.f32 %v202, %v353
      %v355 = vpop.f32.mrb[0].mxu0
      %v356 = vpop.f32.mrb[0].mxu0
      %v357 = vadd.f32 %v202, %v356
      %v358 = vpop.f32.mrb[0].mxu0
      %359 = vmatprep.mubr.bf16.mxu0 0
      %360 = vmatmul.mubr.bf16.gmra.mrb[0].mxu0 %v279
      %v361 = vpop.f32.mrb[0].mxu0
      %v362 = vadd.f32 %v202, %v361
      %v363 = vpop.f32.mrb[0].mxu0
      %v364 = vpop.f32.mrb[0].mxu0
      %v365 = vadd.f32 %v202, %v364
      %v366 = vpop.f32.mrb[0].mxu0
      %367 = vmatprep.mubr.bf16.mxu0 0
      %368 = vmatmul.mubr.bf16.gmra.mrb[0].mxu0 %v282
      %v369 = vpop.f32.mrb[0].mxu0
      %v370 = vadd.f32 %v202, %v369
      %v371 = vpop.f32.mrb[0].mxu0
      %v372 = vpop.f32.mrb[0].mxu0
      %v373 = vadd.f32 %v202, %v372
      %v374 = vpop.f32.mrb[0].mxu0
      %375 = vmatprep.mubr.bf16.mxu0 0
      %376 = vmatmul.mubr.bf16.gmra.mrb[0].mxu0 %v285
      %v377 = vpop.f32.mrb[0].mxu0
      %v378 = vadd.f32 %v202, %v377
      %v379 = vpop.f32.mrb[0].mxu0
      %v380 = vpop.f32.mrb[0].mxu0
      %v381 = vadd.f32 %v202, %v380
      %v382 = vpop.f32.mrb[0].mxu0
      %383 = vdwg.mxu0
      %vm384 = vcmp.gt.f32.partialorder %v322, 0.0
      %vm385 = vcmp.gt.f32.partialorder %v325, 0.0
      %vm386 = vcmp.gt.f32.partialorder %v330, 0.0
      %vm387 = vcmp.gt.f32.partialorder %v333, 0.0
      %vm388 = vcmp.gt.f32.partialorder %v338, 0.0
      %vm389 = vcmp.gt.f32.partialorder %v341, 0.0
      %vm390 = vcmp.gt.f32.partialorder %v346, 0.0
      %vm391 = vcmp.gt.f32.partialorder %v349, 0.0
      %vm392 = vcmp.gt.f32.partialorder %v354, 0.0
      %vm393 = vcmp.gt.f32.partialorder %v357, 0.0
      %vm394 = vcmp.gt.f32.partialorder %v362, 0.0
      %vm395 = vcmp.gt.f32.partialorder %v365, 0.0
      %vm396 = vcmp.gt.f32.partialorder %v370, 0.0
      %vm397 = vcmp.gt.f32.partialorder %v373, 0.0
      %vm398 = vcmp.gt.f32.partialorder %v378, 0.0
      %vm399 = vcmp.gt.f32.partialorder %v381, 0.0
      %v400 = vmul.f32 %v322, 0.2
      %v401 = vmul.f32 %v325, 0.2
      %v402 = vmul.f32 %v330, 0.2
      %v403 = vmul.f32 %v333, 0.2
      %v404 = vmul.f32 %v338, 0.2
      %v405 = vmul.f32 %v341, 0.2
      %v406 = vmul.f32 %v346, 0.2
      %v407 = vmul.f32 %v349, 0.2
      %v408 = vmul.f32 %v354, 0.2
      %v409 = vmul.f32 %v357, 0.2
      %v410 = vmul.f32 %v362, 0.2
      %v411 = vmul.f32 %v365, 0.2
      %v412 = vmul.f32 %v370, 0.2
      %v413 = vmul.f32 %v373, 0.2
      %v414 = vmul.f32 %v378, 0.2
      %v415 = vmul.f32 %v381, 0.2
      %v416 = vsel %vm384, %v322, %v400
      %v417 = vsel %vm385, %v325, %v401
      %v418 = vsel %vm386, %v330, %v402
      %v419 = vsel %vm387, %v333, %v403
      %v420 = vsel %vm388, %v338, %v404
      %v421 = vsel %vm389, %v341, %v405
      %v422 = vsel %vm390, %v346, %v406
      %v423 = vsel %vm391, %v349, %v407
      %v424 = vsel %vm392, %v354, %v408
      %v425 = vsel %vm393, %v357, %v409
      %v426 = vsel %vm394, %v362, %v410
      %v427 = vsel %vm395, %v365, %v411
      %v428 = vsel %vm396, %v370, %v412
      %v429 = vsel %vm397, %v373, %v413
      %v430 = vsel %vm398, %v378, %v414
      %v431 = vsel %vm399, %v381, %v415
      %v432 = vpack.c.bf16 %v417, %v416
      %v433 = vpack.c.bf16 %v419, %v418
      %v434 = vpack.c.bf16 %v421, %v420
      %v435 = vpack.c.bf16 %v423, %v422
      %v436 = vpack.c.bf16 %v425, %v424
      %v437 = vpack.c.bf16 %v427, %v426
      %v438 = vpack.c.bf16 %v429, %v428
      %v439 = vpack.c.bf16 %v431, %v430
      %v448 = vunpack.c.l.b16 %v432
      %v449 = vunpack.c.h.b16 %v432
      %v450 = vunpack.c.l.b16 %v433
      %v451 = vunpack.c.h.b16 %v433
      %v452 = vunpack.c.l.b16 %v434
      %v453 = vunpack.c.h.b16 %v434
      %v454 = vunpack.c.l.b16 %v435
      %v455 = vunpack.c.h.b16 %v435
      %v456 = vunpack.c.l.b16 %v436
      %v457 = vunpack.c.h.b16 %v436
      %v458 = vunpack.c.l.b16 %v437
      %v459 = vunpack.c.h.b16 %v437
      %v460 = vunpack.c.l.b16 %v438
      %v461 = vunpack.c.h.b16 %v438
      %v462 = vunpack.c.l.b16 %v439
      %v463 = vunpack.c.h.b16 %v439
      %v464 = vpack.c.b16 %v448, %v448
      %v465 = vpack.c.b16 %v449, %v449
      %v466 = vpack.c.b16 %v450, %v450
      %v467 = vpack.c.b16 %v451, %v451
      %v468 = vpack.c.b16 %v452, %v452
      %v469 = vpack.c.b16 %v453, %v453
      %v470 = vpack.c.b16 %v454, %v454
      %v471 = vpack.c.b16 %v455, %v455
      %v472 = vpack.c.b16 %v456, %v456
      %v473 = vpack.c.b16 %v457, %v457
      %v474 = vpack.c.b16 %v458, %v458
      %v475 = vpack.c.b16 %v459, %v459
      %v476 = vpack.c.b16 %v460, %v460
      %v477 = vpack.c.b16 %v461, %v461
      %v478 = vpack.c.b16 %v462, %v462
      %v479 = vpack.c.b16 %v463, %v463
      %vm496 = vcmask 125952
      %497 = vst.msk [vmem:[%s172] sm:$0xf] %vm496, %v464
      %498 = vst.msk [vmem:[%s172 + $0x4] sm:$0xf] %vm496, %v465
      %499 = vst.msk [vmem:[%s172 + $0x8] sm:$0xf] %vm496, %v466
      %500 = vst.msk [vmem:[%s172 + $0xc] sm:$0xf] %vm496, %v467
      %501 = vst.msk [vmem:[%s172 + $0x10] sm:$0xf] %vm496, %v468
      %502 = vst.msk [vmem:[%s172 + $0x14] sm:$0xf] %vm496, %v469
      %503 = vst.msk [vmem:[%s172 + $0x18] sm:$0xf] %vm496, %v470
      %504 = vst.msk [vmem:[%s172 + $0x1c] sm:$0xf] %vm496, %v471
      %505 = vst.msk [vmem:[%s172 + $0x20] sm:$0xf] %vm496, %v472
      %506 = vst.msk [vmem:[%s172 + $0x24] sm:$0xf] %vm496, %v473
      %507 = vst.msk [vmem:[%s172 + $0x28] sm:$0xf] %vm496, %v474
      %508 = vst.msk [vmem:[%s172 + $0x2c] sm:$0xf] %vm496, %v475
      %509 = vst.msk [vmem:[%s172 + $0x30] sm:$0xf] %vm496, %v476
      %510 = vst.msk [vmem:[%s172 + $0x34] sm:$0xf] %vm496, %v477
      %511 = vst.msk [vmem:[%s172 + $0x38] sm:$0xf] %vm496, %v478
      %512 = vst.msk [vmem:[%s172 + $0x3c] sm:$0xf] %vm496, %v479
      %s513 = smul.u32 16, %s14
      %p514 = scmp.lt.s32.totalorder %s513, 63
      %s515 = scalar_select %p514, %s513, 63
      %s516 = smul.addr %s515, 4
      %s517 = scalar_lea.vmem %s3, %s516
      // Predicated region
      $region33: #{discriminator_forward.4} parent=31 // pred_check
        %p518 = pneg %p100
      $region34: #{discriminator_forward.4} parent=31 // pred_check_branch
        %520 = sbr.rel (%p518) target = $region36
      $region35: #{discriminator_forward.4} parent=31 // pred_region
        %s521 = smul.u32 16, %s14
      $region36: #{discriminator_forward.4} parent=31 // pred_fallthru
        _
    $region32: #{discriminator_forward.4} parent=5 // pred_fallthru
      _
    %p522 = scmp.le.s32.totalorder 2, %s9
    // Predicated region
    $region37: #{discriminator_forward.4} parent=5 // pred_check
      %p523 = pneg %p522
    $region38: #{discriminator_forward.4} parent=5 // pred_check_branch
      %525 = sbr.rel (%p523) target = $region40
    $region39: #{discriminator_forward.4} parent=5 // pred_region
      %s526 = ssub.s32 %s9, 2
      // Predicated region
      $region41: #{discriminator_forward.4} parent=39 // pred_check
        %p527 = pneg %p106
      $region42: #{discriminator_forward.4} parent=39 // pred_check_branch
        %529 = sbr.rel (%p527) target = $region44
      $region43: #{discriminator_forward.4} parent=39 // pred_region
        %s530 = smul.u32 16, %s15
        %p531 = scmp.lt.s32.totalorder %s530, 63
        %s532 = scalar_select %p531, %s530, 63
        %s533 = smul.addr %s532, 4
        %s534 = scalar_lea.vmem %s3, %s533
      $region44: #{discriminator_forward.4} parent=39 // pred_fallthru
        _
    $region40: #{discriminator_forward.4} parent=5 // pred_fallthru
      _
  $region6: #{discriminator_forward.4} parent=0 // loop_footer
    %s13 = sadd.s32 1, %s9
  $region7: #{discriminator_forward.4} parent=0 // loop_footer_branch
    %8 = sbr.rel target = $region3
  $region8: #{discriminator_forward.4} parent=0 // loop_exit
    _

// kernel: discriminator_forward.5
$region0: #{discriminator_forward.5}
  #allocation0 [shape = 'u32[]', space=smem, size = 0x4, offset = 0x4, fixed_abs, tag = 'smem constant byte address 0x4 - core index']
  #allocation1 [shape = 'u32[144,128]{1,0:T(1,128)}', space=vmem, size = 0x12000, scoped, tag = 'internal scratch']
  %s0 = inlined_call_operand.vmem [shape: bf16[128,256], index: 0, kind: input, shape index: {}]
  %s1 = inlined_call_operand.vmem [shape: bf16[256,32], index: 1, kind: input, shape index: {}]
  %s2 = inlined_call_operand.vmem [shape: f32[1,32], index: 2, kind: input, shape index: {}]
  %s3 = inlined_call_operand.vmem [shape: f32[1,32], index: 3, kind: input, shape index: {}]
  %s4 = inlined_call_operand.vmem [shape: f32[1,32], index: 4, kind: input, shape index: {}]
  %s5 = inlined_call_operand.vmem [shape: bf16[128,32], index: 5, kind: output, shape index: {}]
  %s6 = sld [smem:[#allocation0]]
  $region30: #{discriminator_forward.5} parent=0
    _
  %s8 = ssub.s32 1, %s6
  %s9 = scalar_select 0, %s8, %s6
  // Predicated region
  $region2: #{discriminator_forward.5} parent=0 // pred_check
    _
  $region3: #{discriminator_forward.5} parent=0 // pred_check_branch
    %11 = sbr.rel (0) target = $region5
  $region4: #{discriminator_forward.5} parent=0 // pred_region
    _
  $region5: #{discriminator_forward.5} parent=0 // pred_fallthru
    _
  // Predicated region
  $region6: #{discriminator_forward.5} parent=0 // pred_check
    _
  $region7: #{discriminator_forward.5} parent=0 // pred_check_branch
    %13 = sbr.rel (0) target = $region9
  $region8: #{discriminator_forward.5} parent=0 // pred_region
    _
  $region9: #{discriminator_forward.5} parent=0 // pred_fallthru
    _
  // Predicated region
  $region10: #{discriminator_forward.5} parent=0 // pred_check
    _
  $region11: #{discriminator_forward.5} parent=0 // pred_check_branch
    %15 = sbr.rel (0) target = $region13
  $region12: #{discriminator_forward.5} parent=0 // pred_region
    _
  $region13: #{discriminator_forward.5} parent=0 // pred_fallthru
    _
  // Predicated region
  $region14: #{discriminator_forward.5} parent=0 // pred_check
    _
  $region15: #{discriminator_forward.5} parent=0 // pred_check_branch
    %17 = sbr.rel (0) target = $region17
  $region16: #{discriminator_forward.5} parent=0 // pred_region
    _
  $region17: #{discriminator_forward.5} parent=0 // pred_fallthru
    _
  // Predicated region
  $region18: #{discriminator_forward.5} parent=0 // pred_check
    _
  $region19: #{discriminator_forward.5} parent=0 // pred_check_branch
    %19 = sbr.rel (0) target = $region21
  $region20: #{discriminator_forward.5} parent=0 // pred_region
    _
  $region21: #{discriminator_forward.5} parent=0 // pred_fallthru
    _
  %v21 = vld [vmem:[%s0] sm:$0xff]
  %v22 = vld [vmem:[%s0 + $0x8] sm:$0xff]
  %v23 = vld [vmem:[%s0 + $0x10] sm:$0xff]
  %v24 = vld [vmem:[%s0 + $0x18] sm:$0xff]
  %v25 = vld [vmem:[%s0 + $0x20] sm:$0xff]
  %v26 = vld [vmem:[%s0 + $0x28] sm:$0xff]
  %v27 = vld [vmem:[%s0 + $0x30] sm:$0xff]
  %v28 = vld [vmem:[%s0 + $0x38] sm:$0xff]
  %v29 = vld [vmem:[%s0 + $0x40] sm:$0xff]
  %v30 = vld [vmem:[%s0 + $0x48] sm:$0xff]
  %v31 = vld [vmem:[%s0 + $0x50] sm:$0xff]
  %v32 = vld [vmem:[%s0 + $0x58] sm:$0xff]
  %v33 = vld [vmem:[%s0 + $0x60] sm:$0xff]
  %v34 = vld [vmem:[%s0 + $0x68] sm:$0xff]
  %v35 = vld [vmem:[%s0 + $0x70] sm:$0xff]
  %v36 = vld [vmem:[%s0 + $0x78] sm:$0xff]
  %v37 = vld [vmem:[%s1] sm:$0xf]
  %v38 = vld [vmem:[%s1 + $0x4] sm:$0xf]
  %v39 = vld [vmem:[%s1 + $0x8] sm:$0xf]
  %v40 = vld [vmem:[%s1 + $0xc] sm:$0xf]
  %v41 = vld [vmem:[%s1 + $0x10] sm:$0xf]
  %v42 = vld [vmem:[%s1 + $0x14] sm:$0xf]
  %v43 = vld [vmem:[%s1 + $0x18] sm:$0xf]
  %v44 = vld [vmem:[%s1 + $0x1c] sm:$0xf]
  %v45 = vld [vmem:[%s1 + $0x20] sm:$0xf]
  %v46 = vld [vmem:[%s1 + $0x24] sm:$0xf]
  %v47 = vld [vmem:[%s1 + $0x28] sm:$0xf]
  %v48 = vld [vmem:[%s1 + $0x2c] sm:$0xf]
  %v49 = vld [vmem:[%s1 + $0x30] sm:$0xf]
  %v50 = vld [vmem:[%s1 + $0x34] sm:$0xf]
  %v51 = vld [vmem:[%s1 + $0x38] sm:$0xf]
  %v52 = vld [vmem:[%s1 + $0x3c] sm:$0xf]
  %v53 = vld [vmem:[%s1 + $0x40] sm:$0xf]
  %v54 = vld [vmem:[%s1 + $0x44] sm:$0xf]
  %v55 = vld [vmem:[%s1 + $0x48] sm:$0xf]
  %v56 = vld [vmem:[%s1 + $0x4c] sm:$0xf]
  %v57 = vld [vmem:[%s1 + $0x50] sm:$0xf]
  %v58 = vld [vmem:[%s1 + $0x54] sm:$0xf]
  %v59 = vld [vmem:[%s1 + $0x58] sm:$0xf]
  %v60 = vld [vmem:[%s1 + $0x5c] sm:$0xf]
  %v61 = vld [vmem:[%s1 + $0x60] sm:$0xf]
  %v62 = vld [vmem:[%s1 + $0x64] sm:$0xf]
  %v63 = vld [vmem:[%s1 + $0x68] sm:$0xf]
  %v64 = vld [vmem:[%s1 + $0x6c] sm:$0xf]
  %v65 = vld [vmem:[%s1 + $0x70] sm:$0xf]
  %v66 = vld [vmem:[%s1 + $0x74] sm:$0xf]
  %v67 = vld [vmem:[%s1 + $0x78] sm:$0xf]
  %v68 = vld [vmem:[%s1 + $0x7c] sm:$0xf]
  %v69 = vld [vmem:[%s2] sm:$0x1]
  %v71 = vlaneseq
  %v72 = vshrl.u32 %v71, 7
  %v73 = vsub.s32 0, %v72
  %v74 = vrot.slane %v69, %v73
  %v92 = vunpack.c.l.b16 %v21
  %v93 = vunpack.c.h.b16 %v21
  %v94 = vunpack.c.l.b16 %v22
  %v95 = vunpack.c.h.b16 %v22
  %v96 = vunpack.c.l.b16 %v23
  %v97 = vunpack.c.h.b16 %v23
  %v98 = vunpack.c.l.b16 %v24
  %v99 = vunpack.c.h.b16 %v24
  %v100 = vunpack.c.l.b16 %v25
  %v101 = vunpack.c.h.b16 %v25
  %v102 = vunpack.c.l.b16 %v26
  %v103 = vunpack.c.h.b16 %v26
  %v104 = vunpack.c.l.b16 %v27
  %v105 = vunpack.c.h.b16 %v27
  %v106 = vunpack.c.l.b16 %v28
  %v107 = vunpack.c.h.b16 %v28
  %v108 = vunpack.c.l.b16 %v29
  %v109 = vunpack.c.h.b16 %v29
  %v110 = vunpack.c.l.b16 %v30
  %v111 = vunpack.c.h.b16 %v30
  %v112 = vunpack.c.l.b16 %v31
  %v113 = vunpack.c.h.b16 %v31
  %v114 = vunpack.c.l.b16 %v32
  %v115 = vunpack.c.h.b16 %v32
  %v116 = vunpack.c.l.b16 %v33
  %v117 = vunpack.c.h.b16 %v33
  %v118 = vunpack.c.l.b16 %v34
  %v119 = vunpack.c.h.b16 %v34
  %v120 = vunpack.c.l.b16 %v35
  %v121 = vunpack.c.h.b16 %v35
  %v122 = vunpack.c.l.b16 %v36
  %v123 = vunpack.c.h.b16 %v36
  %v124 = vpack.c.b16 %v94, %v92
  %v125 = vpack.c.b16 %v95, %v93
  %v126 = vpack.c.b16 %v98, %v96
  %v127 = vpack.c.b16 %v99, %v97
  %v128 = vpack.c.b16 %v102, %v100
  %v129 = vpack.c.b16 %v103, %v101
  %v130 = vpack.c.b16 %v106, %v104
  %v131 = vpack.c.b16 %v107, %v105
  %v132 = vpack.c.b16 %v110, %v108
  %v133 = vpack.c.b16 %v111, %v109
  %v134 = vpack.c.b16 %v114, %v112
  %v135 = vpack.c.b16 %v115, %v113
  %v136 = vpack.c.b16 %v118, %v116
  %v137 = vpack.c.b16 %v119, %v117
  %v138 = vpack.c.b16 %v122, %v120
  %v139 = vpack.c.b16 %v123, %v121
  %v188 = vunpack.c.l.b16 %v37
  %v189 = vunpack.c.l.b16 %v38
  %v190 = vunpack.c.l.b16 %v39
  %v191 = vunpack.c.l.b16 %v40
  %v192 = vunpack.c.l.b16 %v41
  %v193 = vunpack.c.l.b16 %v42
  %v194 = vunpack.c.l.b16 %v43
  %v195 = vunpack.c.l.b16 %v44
  %v196 = vunpack.c.l.b16 %v45
  %v197 = vunpack.c.l.b16 %v46
  %v198 = vunpack.c.l.b16 %v47
  %v199 = vunpack.c.l.b16 %v48
  %v200 = vunpack.c.l.b16 %v49
  %v201 = vunpack.c.l.b16 %v50
  %v202 = vunpack.c.l.b16 %v51
  %v203 = vunpack.c.l.b16 %v52
  %v204 = vunpack.c.l.b16 %v53
  %v205 = vunpack.c.l.b16 %v54
  %v206 = vunpack.c.l.b16 %v55
  %v207 = vunpack.c.l.b16 %v56
  %v208 = vunpack.c.l.b16 %v57
  %v209 = vunpack.c.l.b16 %v58
  %v210 = vunpack.c.l.b16 %v59
  %v211 = vunpack.c.l.b16 %v60
  %v212 = vunpack.c.l.b16 %v61
  %v213 = vunpack.c.l.b16 %v62
  %v214 = vunpack.c.l.b16 %v63
  %v215 = vunpack.c.l.b16 %v64
  %v216 = vunpack.c.l.b16 %v65
  %v217 = vunpack.c.l.b16 %v66
  %v218 = vunpack.c.l.b16 %v67
  %v219 = vunpack.c.l.b16 %v68
  %v220 = vpack.c.b16 %v189, %v188
  %v221 = vpack.c.b16 %v191, %v190
  %v222 = vpack.c.b16 %v193, %v192
  %v223 = vpack.c.b16 %v195, %v194
  %v224 = vpack.c.b16 %v197, %v196
  %v225 = vpack.c.b16 %v199, %v198
  %v226 = vpack.c.b16 %v201, %v200
  %v227 = vpack.c.b16 %v203, %v202
  %v228 = vpack.c.b16 %v205, %v204
  %v229 = vpack.c.b16 %v207, %v206
  %v230 = vpack.c.b16 %v209, %v208
  %v231 = vpack.c.b16 %v211, %v210
  %v232 = vpack.c.b16 %v213, %v212
  %v233 = vpack.c.b16 %v215, %v214
  %v234 = vpack.c.b16 %v217, %v216
  %v235 = vpack.c.b16 %v219, %v218
  %252 = vmatprep.subr.bf16.mxu0 0
  %253 = vmatpush1.bf16.msra.mxu0 %v220
  %254 = vmatprep.subr.bf16.mxu0 0
  %255 = vmatpush1.bf16.msra.mxu0 %v221
  %256 = vmatprep.subr.bf16.mxu0 0
  %257 = vmatpush1.bf16.msra.mxu0 %v222
  %258 = vmatprep.subr.bf16.mxu0 0
  %259 = vmatpush1.bf16.msra.mxu0 %v223
  %260 = vmatprep.subr.bf16.mxu0 0
  %261 = vmatpush1.bf16.msra.mxu0 %v224
  %262 = vmatprep.subr.bf16.mxu0 0
  %263 = vmatpush1.bf16.msra.mxu0 %v225
  %264 = vmatprep.subr.bf16.mxu0 0
  %265 = vmatpush1.bf16.msra.mxu0 %v226
  %266 = vmatprep.subr.bf16.mxu0 0
  %267 = vmatpush1.bf16.msra.mxu0 %v227
  %268 = vmatprep.subr.bf16.mxu0 0
  %269 = vmatpush1.bf16.msra.mxu0 %v228
  %270 = vmatprep.subr.bf16.mxu0 0
  %271 = vmatpush1.bf16.msra.mxu0 %v229
  %272 = vmatprep.subr.bf16.mxu0 0
  %273 = vmatpush1.bf16.msra.mxu0 %v230
  %274 = vmatprep.subr.bf16.mxu0 0
  %275 = vmatpush1.bf16.msra.mxu0 %v231
  %276 = vmatprep.subr.bf16.mxu0 0
  %277 = vmatpush1.bf16.msra.mxu0 %v232
  %278 = vmatprep.subr.bf16.mxu0 0
  %279 = vmatpush1.bf16.msra.mxu0 %v233
  %280 = vmatprep.subr.bf16.mxu0 0
  %281 = vmatpush1.bf16.msra.mxu0 %v234
  %282 = vmatprep.subr.bf16.mxu0 0
  %283 = vmatpush1.bf16.msra.mxu0 %v235
  %284 = vmatprep.mubr.bf16.mxu0 %v125
  %285 = vmatmul.mubr.bf16.gmra.mrb[0].mxu0 %v124
  %v286 = vpop.f32.mrb[0].mxu0
  %v287 = vadd.f32 %v74, %v286
  %v288 = vpop.f32.mrb[0].mxu0
  %v289 = vpop.f32.mrb[0].mxu0
  %v290 = vadd.f32 %v74, %v289
  %v291 = vpop.f32.mrb[0].mxu0
  %292 = vmatprep.mubr.bf16.mxu0 %v127
  %293 = vmatmul.mubr.bf16.gmra.mrb[0].mxu0 %v126
  %v294 = vpop.f32.mrb[0].mxu0
  %v295 = vadd.f32 %v74, %v294
  %v296 = vpop.f32.mrb[0].mxu0
  %v297 = vpop.f32.mrb[0].mxu0
  %v298 = vadd.f32 %v74, %v297
  %v299 = vpop.f32.mrb[0].mxu0
  %300 = vmatprep.mubr.bf16.mxu0 %v129
  %301 = vmatmul.mubr.bf16.gmra.mrb[0].mxu0 %v128
  %v302 = vpop.f32.mrb[0].mxu0
  %v303 = vadd.f32 %v74, %v302
  %v304 = vpop.f32.mrb[0].mxu0
  %v305 = vpop.f32.mrb[0].mxu0
  %v306 = vadd.f32 %v74, %v305
  %v307 = vpop.f32.mrb[0].mxu0
  %308 = vmatprep.mubr.bf16.mxu0 %v131
  %309 = vmatmul.mubr.bf16.gmra.mrb[0].mxu0 %v130
  %v310 = vpop.f32.mrb[0].mxu0
  %v311 = vadd.f32 %v74, %v310
  %v312 = vpop.f32.mrb[0].mxu0
  %v313 = vpop.f32.mrb[0].mxu0
  %v314 = vadd.f32 %v74, %v313
  %v315 = vpop.f32.mrb[0].mxu0
  %316 = vmatprep.mubr.bf16.mxu0 %v133
  %317 = vmatmul.mubr.bf16.gmra.mrb[0].mxu0 %v132
  %v318 = vpop.f32.mrb[0].mxu0
  %v319 = vadd.f32 %v74, %v318
  %v320 = vpop.f32.mrb[0].mxu0
  %v321 = vpop.f32.mrb[0].mxu0
  %v322 = vadd.f32 %v74, %v321
  %v323 = vpop.f32.mrb[0].mxu0
  %324 = vmatprep.mubr.bf16.mxu0 %v135
  %325 = vmatmul.mubr.bf16.gmra.mrb[0].mxu0 %v134
  %v326 = vpop.f32.mrb[0].mxu0
  %v327 = vadd.f32 %v74, %v326
  %v328 = vpop.f32.mrb[0].mxu0
  %v329 = vpop.f32.mrb[0].mxu0
  %v330 = vadd.f32 %v74, %v329
  %v331 = vpop.f32.mrb[0].mxu0
  %332 = vmatprep.mubr.bf16.mxu0 %v137
  %333 = vmatmul.mubr.bf16.gmra.mrb[0].mxu0 %v136
  %v334 = vpop.f32.mrb[0].mxu0
  %v335 = vadd.f32 %v74, %v334
  %v336 = vpop.f32.mrb[0].mxu0
  %v337 = vpop.f32.mrb[0].mxu0
  %v338 = vadd.f32 %v74, %v337
  %v339 = vpop.f32.mrb[0].mxu0
  %340 = vmatprep.mubr.bf16.mxu0 %v139
  %341 = vmatmul.mubr.bf16.gmra.mrb[0].mxu0 %v138
  %v342 = vpop.f32.mrb[0].mxu0
  %v343 = vadd.f32 %v74, %v342
  %v344 = vpop.f32.mrb[0].mxu0
  %v345 = vpop.f32.mrb[0].mxu0
  %v346 = vadd.f32 %v74, %v345
  %v347 = vpop.f32.mrb[0].mxu0
  %348 = vdwg.mxu0
  %vm349 = vcmask 261120
  %v350 = vsel %vm349, %v287, 0.0
  %v351 = vsel %vm349, %v290, 0.0
  %v352 = vadd.f32 %v350, %v351
  %v353 = vsel %vm349, %v295, 0.0
  %v354 = vadd.f32 %v352, %v353
  %v355 = vsel %vm349, %v298, 0.0
  %v356 = vadd.f32 %v354, %v355
  %v357 = vsel %vm349, %v303, 0.0
  %v358 = vadd.f32 %v356, %v357
  %v359 = vsel %vm349, %v306, 0.0
  %v360 = vadd.f32 %v358, %v359
  %v361 = vsel %vm349, %v311, 0.0
  %v362 = vadd.f32 %v360, %v361
  %v363 = vsel %vm349, %v314, 0.0
  %v364 = vadd.f32 %v362, %v363
  %v365 = vsel %vm349, %v319, 0.0
  %v366 = vadd.f32 %v364, %v365
  %v367 = vsel %vm349, %v322, 0.0
  %v368 = vadd.f32 %v366, %v367
  %v369 = vsel %vm349, %v327, 0.0
  %v370 = vadd.f32 %v368, %v369
  %v371 = vsel %vm349, %v330, 0.0
  %v372 = vadd.f32 %v370, %v371
  %v373 = vsel %vm349, %v335, 0.0
  %v374 = vadd.f32 %v372, %v373
  %v375 = vsel %vm349, %v338, 0.0
  %v376 = vadd.f32 %v374, %v375
  %v377 = vsel %vm349, %v343, 0.0
  %v378 = vadd.f32 %v376, %v377
  %v379 = vsel %vm349, %v346, 0.0
  %v380 = vadd.f32 %v378, %v379
  %v381 = vrot.slane %v380, 4
  %v382 = vadd.f32 %v380, %v381
  %v383 = vrot.slane %v382, 2
  %v384 = vadd.f32 %v382, %v383
  %v385 = vrot.slane %v384, 1
  %v386 = vadd.f32 %v384, %v385
  %v387 = vrcp.pop 128.0
  %v388 = vmul.f32 %v386, %v387
  %v389 = vsub.f32 %v287, %v388
  %v390 = vsub.f32 %v290, %v388
  %v391 = vsub.f32 %v295, %v388
  %v392 = vsub.f32 %v298, %v388
  %v393 = vsub.f32 %v303, %v388
  %v394 = vsub.f32 %v306, %v388
  %v395 = vsub.f32 %v311, %v388
  %v396 = vsub.f32 %v314, %v388
  %v397 = vsub.f32 %v319, %v388
  %v398 = vsub.f32 %v322, %v388
  %v399 = vsub.f32 %v327, %v388
  %v400 = vsub.f32 %v330, %v388
  %v401 = vsub.f32 %v335, %v388
  %v402 = vsub.f32 %v338, %v388
  %v403 = vsub.f32 %v343, %v388
  %v404 = vsub.f32 %v346, %v388
  %v405 = vmul.f32 %v389, %v389
  %v406 = vmul.f32 %v390, %v390
  %v407 = vmul.f32 %v391, %v391
  %v408 = vmul.f32 %v392, %v392
  %v409 = vmul.f32 %v393, %v393
  %v410 = vmul.f32 %v394, %v394
  %v411 = vmul.f32 %v395, %v395
  %v412 = vmul.f32 %v396, %v396
  %v413 = vmul.f32 %v397, %v397
  %v414 = vmul.f32 %v398, %v398
  %v415 = vmul.f32 %v399, %v399
  %v416 = vmul.f32 %v400, %v400
  %v417 = vmul.f32 %v401, %v401
  %v418 = vmul.f32 %v402, %v402
  %v419 = vmul.f32 %v403, %v403
  %v420 = vmul.f32 %v404, %v404
  %v421 = vsel %vm349, %v405, 0.0
  %v422 = vsel %vm349, %v406, 0.0
  %v423 = vadd.f32 %v421, %v422
  %v424 = vsel %vm349, %v407, 0.0
  %v425 = vadd.f32 %v423, %v424
  %v426 = vsel %vm349, %v408, 0.0
  %v427 = vadd.f32 %v425, %v426
  %v428 = vsel %vm349, %v409, 0.0
  %v429 = vadd.f32 %v427, %v428
  %v430 = vsel %vm349, %v410, 0.0
  %v431 = vadd.f32 %v429, %v430
  %v432 = vsel %vm349, %v411, 0.0
  %v433 = vadd.f32 %v431, %v432
  %v434 = vsel %vm349, %v412, 0.0
  %v435 = vadd.f32 %v433, %v434
  %v436 = vsel %vm349, %v413, 0.0
  %v437 = vadd.f32 %v435, %v436
  %v438 = vsel %vm349, %v414, 0.0
  %v439 = vadd.f32 %v437, %v438
  %v440 = vsel %vm349, %v415, 0.0
  %v441 = vadd.f32 %v439, %v440
  %v442 = vsel %vm349, %v416, 0.0
  %v443 = vadd.f32 %v441, %v442
  %v444 = vsel %vm349, %v417, 0.0
  %v445 = vadd.f32 %v443, %v444
  %v446 = vsel %vm349, %v418, 0.0
  %v447 = vadd.f32 %v445, %v446
  %v448 = vsel %vm349, %v419, 0.0
  %v449 = vadd.f32 %v447, %v448
  %v450 = vsel %vm349, %v420, 0.0
  %v451 = vadd.f32 %v449, %v450
  %v452 = vrot.slane %v451, 4
  %v453 = vadd.f32 %v451, %v452
  %v454 = vrot.slane %v453, 2
  %v455 = vadd.f32 %v453, %v454
  %v456 = vrot.slane %v455, 1
  %v457 = vadd.f32 %v455, %v456
  %v458 = vmul.f32 %v457, %v387
  %v459 = vld [vmem:[%s3] sm:$0x1]
  %v460 = vadd.f32 %v458, 1e-05
  %v461 = vrsqrt.pop %v460
  %v462 = vmul.f32 %v459, %v461
  %v464 = vlaneseq
  %v465 = vshrl.u32 %v464, 7
  %v466 = vsub.s32 0, %v465
  %v467 = vrot.slane %v462, %v466
  %v469 = vmul.f32 %v389, %v467
  %v470 = vmul.f32 %v390, %v467
  %v471 = vmul.f32 %v391, %v467
  %v472 = vmul.f32 %v392, %v467
  %v473 = vmul.f32 %v393, %v467
  %v474 = vmul.f32 %v394, %v467
  %v475 = vmul.f32 %v395, %v467
  %v476 = vmul.f32 %v396, %v467
  %v477 = vmul.f32 %v397, %v467
  %v478 = vmul.f32 %v398, %v467
  %v479 = vmul.f32 %v399, %v467
  %v480 = vmul.f32 %v400, %v467
  %v481 = vmul.f32 %v401, %v467
  %v482 = vmul.f32 %v402, %v467
  %v483 = vmul.f32 %v403, %v467
  %v484 = vmul.f32 %v404, %v467
  %v485 = vld [vmem:[%s4] sm:$0x1]
  %v487 = vlaneseq
  %v488 = vshrl.u32 %v487, 7
  %v489 = vsub.s32 0, %v488
  %v490 = vrot.slane %v485, %v489
  %v492 = vadd.f32 %v469, %v490
  %v493 = vadd.f32 %v470, %v490
  %v494 = vadd.f32 %v471, %v490
  %v495 = vadd.f32 %v472, %v490
  %v496 = vadd.f32 %v473, %v490
  %v497 = vadd.f32 %v474, %v490
  %v498 = vadd.f32 %v475, %v490
  %v499 = vadd.f32 %v476, %v490
  %v500 = vadd.f32 %v477, %v490
  %v501 = vadd.f32 %v478, %v490
  %v502 = vadd.f32 %v479, %v490
  %v503 = vadd.f32 %v480, %v490
  %v504 = vadd.f32 %v481, %v490
  %v505 = vadd.f32 %v482, %v490
  %v506 = vadd.f32 %v483, %v490
  %v507 = vadd.f32 %v484, %v490
  %vm508 = vcmp.gt.f32.partialorder %v492, 0.0
  %vm509 = vcmp.gt.f32.partialorder %v493, 0.0
  %vm510 = vcmp.gt.f32.partialorder %v494, 0.0
  %vm511 = vcmp.gt.f32.partialorder %v495, 0.0
  %vm512 = vcmp.gt.f32.partialorder %v496, 0.0
  %vm513 = vcmp.gt.f32.partialorder %v497, 0.0
  %vm514 = vcmp.gt.f32.partialorder %v498, 0.0
  %vm515 = vcmp.gt.f32.partialorder %v499, 0.0
  %vm516 = vcmp.gt.f32.partialorder %v500, 0.0
  %vm517 = vcmp.gt.f32.partialorder %v501, 0.0
  %vm518 = vcmp.gt.f32.partialorder %v502, 0.0
  %vm519 = vcmp.gt.f32.partialorder %v503, 0.0
  %vm520 = vcmp.gt.f32.partialorder %v504, 0.0
  %vm521 = vcmp.gt.f32.partialorder %v505, 0.0
  %vm522 = vcmp.gt.f32.partialorder %v506, 0.0
  %vm523 = vcmp.gt.f32.partialorder %v507, 0.0
  %v524 = vmul.f32 %v492, 0.2
  %v525 = vmul.f32 %v493, 0.2
  %v526 = vmul.f32 %v494, 0.2
  %v527 = vmul.f32 %v495, 0.2
  %v528 = vmul.f32 %v496, 0.2
  %v529 = vmul.f32 %v497, 0.2
  %v530 = vmul.f32 %v498, 0.2
  %v531 = vmul.f32 %v499, 0.2
  %v532 = vmul.f32 %v500, 0.2
  %v533 = vmul.f32 %v501, 0.2
  %v534 = vmul.f32 %v502, 0.2
  %v535 = vmul.f32 %v503, 0.2
  %v536 = vmul.f32 %v504, 0.2
  %v537 = vmul.f32 %v505, 0.2
  %v538 = vmul.f32 %v506, 0.2
  %v539 = vmul.f32 %v507, 0.2
  %v540 = vsel %vm508, %v492, %v524
  %v541 = vsel %vm509, %v493, %v525
  %v542 = vsel %vm510, %v494, %v526
  %v543 = vsel %vm511, %v495, %v527
  %v544 = vsel %vm512, %v496, %v528
  %v545 = vsel %vm513, %v497, %v529
  %v546 = vsel %vm514, %v498, %v530
  %v547 = vsel %vm515, %v499, %v531
  %v548 = vsel %vm516, %v500, %v532
  %v549 = vsel %vm517, %v501, %v533
  %v550 = vsel %vm518, %v502, %v534
  %v551 = vsel %vm519, %v503, %v535
  %v552 = vsel %vm520, %v504, %v536
  %v553 = vsel %vm521, %v505, %v537
  %v554 = vsel %vm522, %v506, %v538
  %v555 = vsel %vm523, %v507, %v539
  %v556 = vpack.c.bf16 %v541, %v540
  %v557 = vpack.c.bf16 %v543, %v542
  %v558 = vpack.c.bf16 %v545, %v544
  %v559 = vpack.c.bf16 %v547, %v546
  %v560 = vpack.c.bf16 %v549, %v548
  %v561 = vpack.c.bf16 %v551, %v550
  %v562 = vpack.c.bf16 %v553, %v552
  %v563 = vpack.c.bf16 %v555, %v554
  %v572 = vunpack.c.l.b16 %v556
  %v573 = vunpack.c.h.b16 %v556
  %v574 = vunpack.c.l.b16 %v557
  %v575 = vunpack.c.h.b16 %v557
  %v576 = vunpack.c.l.b16 %v558
  %v577 = vunpack.c.h.b16 %v558
  %v578 = vunpack.c.l.b16 %v559
  %v579 = vunpack.c.h.b16 %v559
  %v580 = vunpack.c.l.b16 %v560
  %v581 = vunpack.c.h.b16 %v560
  %v582 = vunpack.c.l.b16 %v561
  %v583 = vunpack.c.h.b16 %v561
  %v584 = vunpack.c.l.b16 %v562
  %v585 = vunpack.c.h.b16 %v562
  %v586 = vunpack.c.l.b16 %v563
  %v587 = vunpack.c.h.b16 %v563
  %v588 = vpack.c.b16 %v572, %v572
  %v589 = vpack.c.b16 %v573, %v573
  %v590 = vpack.c.b16 %v574, %v574
  %v591 = vpack.c.b16 %v575, %v575
  %v592 = vpack.c.b16 %v576, %v576
  %v593 = vpack.c.b16 %v577, %v577
  %v594 = vpack.c.b16 %v578, %v578
  %v595 = vpack.c.b16 %v579, %v579
  %v596 = vpack.c.b16 %v580, %v580
  %v597 = vpack.c.b16 %v581, %v581
  %v598 = vpack.c.b16 %v582, %v582
  %v599 = vpack.c.b16 %v583, %v583
  %v600 = vpack.c.b16 %v584, %v584
  %v601 = vpack.c.b16 %v585, %v585
  %v602 = vpack.c.b16 %v586, %v586
  %v603 = vpack.c.b16 %v587, %v587
  %vm620 = vcmask 257024
  %621 = vst.msk [vmem:[%s5] sm:$0xf] %vm620, %v588
  %622 = vst.msk [vmem:[%s5 + $0x4] sm:$0xf] %vm620, %v589
  %623 = vst.msk [vmem:[%s5 + $0x8] sm:$0xf] %vm620, %v590
  %624 = vst.msk [vmem:[%s5 + $0xc] sm:$0xf] %vm620, %v591
  %625 = vst.msk [vmem:[%s5 + $0x10] sm:$0xf] %vm620, %v592
  %626 = vst.msk [vmem:[%s5 + $0x14] sm:$0xf] %vm620, %v593
  %627 = vst.msk [vmem:[%s5 + $0x18] sm:$0xf] %vm620, %v594
  %628 = vst.msk [vmem:[%s5 + $0x1c] sm:$0xf] %vm620, %v595
  %629 = vst.msk [vmem:[%s5 + $0x20] sm:$0xf] %vm620, %v596
  %630 = vst.msk [vmem:[%s5 + $0x24] sm:$0xf] %vm620, %v597
  %631 = vst.msk [vmem:[%s5 + $0x28] sm:$0xf] %vm620, %v598
  %632 = vst.msk [vmem:[%s5 + $0x2c] sm:$0xf] %vm620, %v599
  %633 = vst.msk [vmem:[%s5 + $0x30] sm:$0xf] %vm620, %v600
  %634 = vst.msk [vmem:[%s5 + $0x34] sm:$0xf] %vm620, %v601
  %635 = vst.msk [vmem:[%s5 + $0x38] sm:$0xf] %vm620, %v602
  %636 = vst.msk [vmem:[%s5 + $0x3c] sm:$0xf] %vm620, %v603
  // Predicated region
  $region22: #{discriminator_forward.5} parent=0 // pred_check
    _
  $region23: #{discriminator_forward.5} parent=0 // pred_check_branch
    %638 = sbr.rel (0) target = $region25
  $region24: #{discriminator_forward.5} parent=0 // pred_region
    _
  $region25: #{discriminator_forward.5} parent=0 // pred_fallthru
    _
  // Predicated region
  $region26: #{discriminator_forward.5} parent=0 // pred_check
    _
  $region27: #{discriminator_forward.5} parent=0 // pred_check_branch
    %640 = sbr.rel (0) target = $region29
  $region28: #{discriminator_forward.5} parent=0 // pred_region
    _
  $region29: #{discriminator_forward.5} parent=0 // pred_fallthru
    _

// kernel: discriminator_forward.6
$region0: #{discriminator_forward.6}
  #allocation0 [shape = 'u32[]', space=smem, size = 0x4, offset = 0x4, fixed_abs, tag = 'smem constant byte address 0x4 - core index']
  #allocation1 [shape = 'u32[144,128]{1,0:T(1,128)}', space=vmem, size = 0x12000, scoped, tag = 'internal scratch']
  %s0 = inlined_call_operand.vmem [shape: bf16[32,512], index: 0, kind: input, shape index: {}]
  %s1 = inlined_call_operand.vmem [shape: bf16[512,64], index: 1, kind: input, shape index: {}]
  %s2 = inlined_call_operand.vmem [shape: f32[1,64], index: 2, kind: input, shape index: {}]
  %s3 = inlined_call_operand.vmem [shape: f32[1,64], index: 3, kind: input, shape index: {}]
  %s4 = inlined_call_operand.vmem [shape: f32[1,64], index: 4, kind: input, shape index: {}]
  %s5 = inlined_call_operand.vmem [shape: bf16[32,64], index: 5, kind: output, shape index: {}]
  %s6 = sld [smem:[#allocation0]]
  $region30: #{discriminator_forward.6} parent=0
    _
  %s8 = ssub.s32 1, %s6
  %s9 = scalar_select 0, %s8, %s6
  // Predicated region
  $region2: #{discriminator_forward.6} parent=0 // pred_check
    _
  $region3: #{discriminator_forward.6} parent=0 // pred_check_branch
    %11 = sbr.rel (0) target = $region5
  $region4: #{discriminator_forward.6} parent=0 // pred_region
    _
  $region5: #{discriminator_forward.6} parent=0 // pred_fallthru
    _
  // Predicated region
  $region6: #{discriminator_forward.6} parent=0 // pred_check
    _
  $region7: #{discriminator_forward.6} parent=0 // pred_check_branch
    %13 = sbr.rel (0) target = $region9
  $region8: #{discriminator_forward.6} parent=0 // pred_region
    _
  $region9: #{discriminator_forward.6} parent=0 // pred_fallthru
    _
  // Predicated region
  $region10: #{discriminator_forward.6} parent=0 // pred_check
    _
  $region11: #{discriminator_forward.6} parent=0 // pred_check_branch
    %15 = sbr.rel (0) target = $region13
  $region12: #{discriminator_forward.6} parent=0 // pred_region
    _
  $region13: #{discriminator_forward.6} parent=0 // pred_fallthru
    _
  // Predicated region
  $region14: #{discriminator_forward.6} parent=0 // pred_check
    _
  $region15: #{discriminator_forward.6} parent=0 // pred_check_branch
    %17 = sbr.rel (0) target = $region17
  $region16: #{discriminator_forward.6} parent=0 // pred_region
    _
  $region17: #{discriminator_forward.6} parent=0 // pred_fallthru
    _
  // Predicated region
  $region18: #{discriminator_forward.6} parent=0 // pred_check
    _
  $region19: #{discriminator_forward.6} parent=0 // pred_check_branch
    %19 = sbr.rel (0) target = $region21
  $region20: #{discriminator_forward.6} parent=0 // pred_region
    _
  $region21: #{discriminator_forward.6} parent=0 // pred_fallthru
    _
  %v21 = vld [vmem:[%s0] sm:$0xff]
  %v22 = vld [vmem:[%s0 + $0x8] sm:$0xff]
  %v23 = vld [vmem:[%s0 + $0x10] sm:$0xff]
  %v24 = vld [vmem:[%s0 + $0x18] sm:$0xff]
  %v25 = vld [vmem:[%s0 + $0x20] sm:$0xff]
  %v26 = vld [vmem:[%s0 + $0x28] sm:$0xff]
  %v27 = vld [vmem:[%s0 + $0x30] sm:$0xff]
  %v28 = vld [vmem:[%s0 + $0x38] sm:$0xff]
  %v29 = vld [vmem:[%s1] sm:$0xf]
  %v30 = vld [vmem:[%s1 + $0x4] sm:$0xf]
  %v31 = vld [vmem:[%s1 + $0x8] sm:$0xf]
  %v32 = vld [vmem:[%s1 + $0xc] sm:$0xf]
  %v33 = vld [vmem:[%s1 + $0x10] sm:$0xf]
  %v34 = vld [vmem:[%s1 + $0x14] sm:$0xf]
  %v35 = vld [vmem:[%s1 + $0x18] sm:$0xf]
  %v36 = vld [vmem:[%s1 + $0x1c] sm:$0xf]
  %v37 = vld [vmem:[%s1 + $0x20] sm:$0xf]
  %v38 = vld [vmem:[%s1 + $0x24] sm:$0xf]
  %v39 = vld [vmem:[%s1 + $0x28] sm:$0xf]
  %v40 = vld [vmem:[%s1 + $0x2c] sm:$0xf]
  %v41 = vld [vmem:[%s1 + $0x30] sm:$0xf]
  %v42 = vld [vmem:[%s1 + $0x34] sm:$0xf]
  %v43 = vld [vmem:[%s1 + $0x38] sm:$0xf]
  %v44 = vld [vmem:[%s1 + $0x3c] sm:$0xf]
  %v45 = vld [vmem:[%s1 + $0x40] sm:$0xf]
  %v46 = vld [vmem:[%s1 + $0x44] sm:$0xf]
  %v47 = vld [vmem:[%s1 + $0x48] sm:$0xf]
  %v48 = vld [vmem:[%s1 + $0x4c] sm:$0xf]
  %v49 = vld [vmem:[%s1 + $0x50] sm:$0xf]
  %v50 = vld [vmem:[%s1 + $0x54] sm:$0xf]
  %v51 = vld [vmem:[%s1 + $0x58] sm:$0xf]
  %v52 = vld [vmem:[%s1 + $0x5c] sm:$0xf]
  %v53 = vld [vmem:[%s1 + $0x60] sm:$0xf]
  %v54 = vld [vmem:[%s1 + $0x64] sm:$0xf]
  %v55 = vld [vmem:[%s1 + $0x68] sm:$0xf]
  %v56 = vld [vmem:[%s1 + $0x6c] sm:$0xf]
  %v57 = vld [vmem:[%s1 + $0x70] sm:$0xf]
  %v58 = vld [vmem:[%s1 + $0x74] sm:$0xf]
  %v59 = vld [vmem:[%s1 + $0x78] sm:$0xf]
  %v60 = vld [vmem:[%s1 + $0x7c] sm:$0xf]
  %v61 = vld [vmem:[%s1 + $0x80] sm:$0xf]
  %v62 = vld [vmem:[%s1 + $0x84] sm:$0xf]
  %v63 = vld [vmem:[%s1 + $0x88] sm:$0xf]
  %v64 = vld [vmem:[%s1 + $0x8c] sm:$0xf]
  %v65 = vld [vmem:[%s1 + $0x90] sm:$0xf]
  %v66 = vld [vmem:[%s1 + $0x94] sm:$0xf]
  %v67 = vld [vmem:[%s1 + $0x98] sm:$0xf]
  %v68 = vld [vmem:[%s1 + $0x9c] sm:$0xf]
  %v69 = vld [vmem:[%s1 + $0xa0] sm:$0xf]
  %v70 = vld [vmem:[%s1 + $0xa4] sm:$0xf]
  %v71 = vld [vmem:[%s1 + $0xa8] sm:$0xf]
  %v72 = vld [vmem:[%s1 + $0xac] sm:$0xf]
  %v73 = vld [vmem:[%s1 + $0xb0] sm:$0xf]
  %v74 = vld [vmem:[%s1 + $0xb4] sm:$0xf]
  %v75 = vld [vmem:[%s1 + $0xb8] sm:$0xf]
  %v76 = vld [vmem:[%s1 + $0xbc] sm:$0xf]
  %v77 = vld [vmem:[%s1 + $0xc0] sm:$0xf]
  %v78 = vld [vmem:[%s1 + $0xc4] sm:$0xf]
  %v79 = vld [vmem:[%s1 + $0xc8] sm:$0xf]
  %v80 = vld [vmem:[%s1 + $0xcc] sm:$0xf]
  %v81 = vld [vmem:[%s1 + $0xd0] sm:$0xf]
  %v82 = vld [vmem:[%s1 + $0xd4] sm:$0xf]
  %v83 = vld [vmem:[%s1 + $0xd8] sm:$0xf]
  %v84 = vld [vmem:[%s1 + $0xdc] sm:$0xf]
  %v85 = vld [vmem:[%s1 + $0xe0] sm:$0xf]
  %v86 = vld [vmem:[%s1 + $0xe4] sm:$0xf]
  %v87 = vld [vmem:[%s1 + $0xe8] sm:$0xf]
  %v88 = vld [vmem:[%s1 + $0xec] sm:$0xf]
  %v89 = vld [vmem:[%s1 + $0xf0] sm:$0xf]
  %v90 = vld [vmem:[%s1 + $0xf4] sm:$0xf]
  %v91 = vld [vmem:[%s1 + $0xf8] sm:$0xf]
  %v92 = vld [vmem:[%s1 + $0xfc] sm:$0xf]
  %v93 = vld [vmem:[%s2] sm:$0x1]
  %v95 = vlaneseq
  %v96 = vshrl.u32 %v95, 7
  %v97 = vsub.s32 0, %v96
  %v98 = vrot.slane %v93, %v97
  %v108 = vunpack.c.l.b16 %v21
  %v109 = vunpack.c.h.b16 %v21
  %v110 = vunpack.c.l.b16 %v22
  %v111 = vunpack.c.h.b16 %v22
  %v112 = vunpack.c.l.b16 %v23
  %v113 = vunpack.c.h.b16 %v23
  %v114 = vunpack.c.l.b16 %v24
  %v115 = vunpack.c.h.b16 %v24
  %v116 = vunpack.c.l.b16 %v25
  %v117 = vunpack.c.h.b16 %v25
  %v118 = vunpack.c.l.b16 %v26
  %v119 = vunpack.c.h.b16 %v26
  %v120 = vunpack.c.l.b16 %v27
  %v121 = vunpack.c.h.b16 %v27
  %v122 = vunpack.c.l.b16 %v28
  %v123 = vunpack.c.h.b16 %v28
  %v124 = vpack.c.b16 %v112, %v108
  %v125 = vpack.c.b16 %v113, %v109
  %v126 = vpack.c.b16 %v114, %v110
  %v127 = vpack.c.b16 %v115, %v111
  %v128 = vpack.c.b16 %v120, %v116
  %v129 = vpack.c.b16 %v121, %v117
  %v130 = vpack.c.b16 %v122, %v118
  %v131 = vpack.c.b16 %v123, %v119
  %v204 = vunpack.c.l.b16 %v29
  %v205 = vunpack.c.l.b16 %v30
  %v206 = vunpack.c.l.b16 %v31
  %v207 = vunpack.c.l.b16 %v32
  %v208 = vunpack.c.l.b16 %v33
  %v209 = vunpack.c.l.b16 %v34
  %v210 = vunpack.c.l.b16 %v35
  %v211 = vunpack.c.l.b16 %v36
  %v212 = vunpack.c.l.b16 %v37
  %v213 = vunpack.c.l.b16 %v38
  %v214 = vunpack.c.l.b16 %v39
  %v215 = vunpack.c.l.b16 %v40
  %v216 = vunpack.c.l.b16 %v41
  %v217 = vunpack.c.l.b16 %v42
  %v218 = vunpack.c.l.b16 %v43
  %v219 = vunpack.c.l.b16 %v44
  %v220 = vunpack.c.l.b16 %v45
  %v221 = vunpack.c.l.b16 %v46
  %v222 = vunpack.c.l.b16 %v47
  %v223 = vunpack.c.l.b16 %v48
  %v224 = vunpack.c.l.b16 %v49
  %v225 = vunpack.c.l.b16 %v50
  %v226 = vunpack.c.l.b16 %v51
  %v227 = vunpack.c.l.b16 %v52
  %v228 = vunpack.c.l.b16 %v53
  %v229 = vunpack.c.l.b16 %v54
  %v230 = vunpack.c.l.b16 %v55
  %v231 = vunpack.c.l.b16 %v56
  %v232 = vunpack.c.l.b16 %v57
  %v233 = vunpack.c.l.b16 %v58
  %v234 = vunpack.c.l.b16 %v59
  %v235 = vunpack.c.l.b16 %v60
  %v236 = vunpack.c.l.b16 %v61
  %v237 = vunpack.c.l.b16 %v62
  %v238 = vunpack.c.l.b16 %v63
  %v239 = vunpack.c.l.b16 %v64
  %v240 = vunpack.c.l.b16 %v65
  %v241 = vunpack.c.l.b16 %v66
  %v242 = vunpack.c.l.b16 %v67
  %v243 = vunpack.c.l.b16 %v68
  %v244 = vunpack.c.l.b16 %v69
  %v245 = vunpack.c.l.b16 %v70
  %v246 = vunpack.c.l.b16 %v71
  %v247 = vunpack.c.l.b16 %v72
  %v248 = vunpack.c.l.b16 %v73
  %v249 = vunpack.c.l.b16 %v74
  %v250 = vunpack.c.l.b16 %v75
  %v251 = vunpack.c.l.b16 %v76
  %v252 = vunpack.c.l.b16 %v77
  %v253 = vunpack.c.l.b16 %v78
  %v254 = vunpack.c.l.b16 %v79
  %v255 = vunpack.c.l.b16 %v80
  %v256 = vunpack.c.l.b16 %v81
  %v257 = vunpack.c.l.b16 %v82
  %v258 = vunpack.c.l.b16 %v83
  %v259 = vunpack.c.l.b16 %v84
  %v260 = vunpack.c.l.b16 %v85
  %v261 = vunpack.c.l.b16 %v86
  %v262 = vunpack.c.l.b16 %v87
  %v263 = vunpack.c.l.b16 %v88
  %v264 = vunpack.c.l.b16 %v89
  %v265 = vunpack.c.l.b16 %v90
  %v266 = vunpack.c.l.b16 %v91
  %v267 = vunpack.c.l.b16 %v92
  %v268 = vpack.c.b16 %v205, %v204
  %v269 = vpack.c.b16 %v207, %v206
  %v270 = vpack.c.b16 %v209, %v208
  %v271 = vpack.c.b16 %v211, %v210
  %v272 = vpack.c.b16 %v213, %v212
  %v273 = vpack.c.b16 %v215, %v214
  %v274 = vpack.c.b16 %v217, %v216
  %v275 = vpack.c.b16 %v219, %v218
  %v276 = vpack.c.b16 %v221, %v220
  %v277 = vpack.c.b16 %v223, %v222
  %v278 = vpack.c.b16 %v225, %v224
  %v279 = vpack.c.b16 %v227, %v226
  %v280 = vpack.c.b16 %v229, %v228
  %v281 = vpack.c.b16 %v231, %v230
  %v282 = vpack.c.b16 %v233, %v232
  %v283 = vpack.c.b16 %v235, %v234
  %v284 = vpack.c.b16 %v237, %v236
  %v285 = vpack.c.b16 %v239, %v238
  %v286 = vpack.c.b16 %v241, %v240
  %v287 = vpack.c.b16 %v243, %v242
  %v288 = vpack.c.b16 %v245, %v244
  %v289 = vpack.c.b16 %v247, %v246
  %v290 = vpack.c.b16 %v249, %v248
  %v291 = vpack.c.b16 %v251, %v250
  %v292 = vpack.c.b16 %v253, %v252
  %v293 = vpack.c.b16 %v255, %v254
  %v294 = vpack.c.b16 %v257, %v256
  %v295 = vpack.c.b16 %v259, %v258
  %v296 = vpack.c.b16 %v261, %v260
  %v297 = vpack.c.b16 %v263, %v262
  %v298 = vpack.c.b16 %v265, %v264
  %v299 = vpack.c.b16 %v267, %v266
  %332 = vmatprep.subr.bf16.mxu0 0
  %333 = vmatpush1.bf16.msra.mxu0 %v268
  %334 = vmatprep.subr.bf16.mxu0 0
  %335 = vmatpush1.bf16.msra.mxu0 %v269
  %336 = vmatprep.subr.bf16.mxu0 0
  %337 = vmatpush1.bf16.msra.mxu0 %v270
  %338 = vmatprep.subr.bf16.mxu0 0
  %339 = vmatpush1.bf16.msra.mxu0 %v271
  %340 = vmatprep.subr.bf16.mxu0 0
  %341 = vmatpush1.bf16.msra.mxu0 %v272
  %342 = vmatprep.subr.bf16.mxu0 0
  %343 = vmatpush1.bf16.msra.mxu0 %v273
  %344 = vmatprep.subr.bf16.mxu0 0
  %345 = vmatpush1.bf16.msra.mxu0 %v274
  %346 = vmatprep.subr.bf16.mxu0 0
  %347 = vmatpush1.bf16.msra.mxu0 %v275
  %348 = vmatprep.subr.bf16.mxu0 0
  %349 = vmatpush1.bf16.msra.mxu0 %v276
  %350 = vmatprep.subr.bf16.mxu0 0
  %351 = vmatpush1.bf16.msra.mxu0 %v277
  %352 = vmatprep.subr.bf16.mxu0 0
  %353 = vmatpush1.bf16.msra.mxu0 %v278
  %354 = vmatprep.subr.bf16.mxu0 0
  %355 = vmatpush1.bf16.msra.mxu0 %v279
  %356 = vmatprep.subr.bf16.mxu0 0
  %357 = vmatpush1.bf16.msra.mxu0 %v280
  %358 = vmatprep.subr.bf16.mxu0 0
  %359 = vmatpush1.bf16.msra.mxu0 %v281
  %360 = vmatprep.subr.bf16.mxu0 0
  %361 = vmatpush1.bf16.msra.mxu0 %v282
  %362 = vmatprep.subr.bf16.mxu0 0
  %363 = vmatpush1.bf16.msra.mxu0 %v283
  %364 = vmatprep.mubr.bf16.mxu0 %v125
  %365 = vmatmul.mubr.bf16.gmra.mrb[0].mxu0 %v124
  %v366 = vpop.f32.mrb[0].mxu0
  %v367 = vadd.f32 %v98, %v366
  %v368 = vpop.f32.mrb[0].mxu0
  %v369 = vpop.f32.mrb[0].mxu0
  %v370 = vadd.f32 %v98, %v369
  %v371 = vpop.f32.mrb[0].mxu0
  %372 = vmatprep.mubr.bf16.mxu0 %v129
  %373 = vmatmul.mubr.bf16.gmra.mrb[0].mxu0 %v128
  %v374 = vpop.f32.mrb[0].mxu0
  %v375 = vadd.f32 %v98, %v374
  %v376 = vpop.f32.mrb[0].mxu0
  %v377 = vpop.f32.mrb[0].mxu0
  %v378 = vadd.f32 %v98, %v377
  %v379 = vpop.f32.mrb[0].mxu0
  %380 = vdwg.mxu0
  %381 = vmatprep.subr.bf16.mxu0 0
  %382 = vmatpush1.bf16.msra.mxu0 %v284
  %383 = vmatprep.subr.bf16.mxu0 0
  %384 = vmatpush1.bf16.msra.mxu0 %v285
  %385 = vmatprep.subr.bf16.mxu0 0
  %386 = vmatpush1.bf16.msra.mxu0 %v286
  %387 = vmatprep.subr.bf16.mxu0 0
  %388 = vmatpush1.bf16.msra.mxu0 %v287
  %389 = vmatprep.subr.bf16.mxu0 0
  %390 = vmatpush1.bf16.msra.mxu0 %v288
  %391 = vmatprep.subr.bf16.mxu0 0
  %392 = vmatpush1.bf16.msra.mxu0 %v289
  %393 = vmatprep.subr.bf16.mxu0 0
  %394 = vmatpush1.bf16.msra.mxu0 %v290
  %395 = vmatprep.subr.bf16.mxu0 0
  %396 = vmatpush1.bf16.msra.mxu0 %v291
  %397 = vmatprep.subr.bf16.mxu0 0
  %398 = vmatpush1.bf16.msra.mxu0 %v292
  %399 = vmatprep.subr.bf16.mxu0 0
  %400 = vmatpush1.bf16.msra.mxu0 %v293
  %401 = vmatprep.subr.bf16.mxu0 0
  %402 = vmatpush1.bf16.msra.mxu0 %v294
  %403 = vmatprep.subr.bf16.mxu0 0
  %404 = vmatpush1.bf16.msra.mxu0 %v295
  %405 = vmatprep.subr.bf16.mxu0 0
  %406 = vmatpush1.bf16.msra.mxu0 %v296
  %407 = vmatprep.subr.bf16.mxu0 0
  %408 = vmatpush1.bf16.msra.mxu0 %v297
  %409 = vmatprep.subr.bf16.mxu0 0
  %410 = vmatpush1.bf16.msra.mxu0 %v298
  %411 = vmatprep.subr.bf16.mxu0 0
  %412 = vmatpush1.bf16.msra.mxu0 %v299
  %413 = vmatprep.mubr.bf16.mxu0 %v127
  %414 = vmatmul.mubr.bf16.gmra.mrb[0].mxu0 %v126
  %v415 = vpop.f32.mrb[0].mxu0
  %v416 = vadd.f32 %v367, %v415
  %v417 = vpop.f32.mrb[0].mxu0
  %v418 = vpop.f32.mrb[0].mxu0
  %v419 = vadd.f32 %v370, %v418
  %v420 = vpop.f32.mrb[0].mxu0
  %421 = vmatprep.mubr.bf16.mxu0 %v131
  %422 = vmatmul.mubr.bf16.gmra.mrb[0].mxu0 %v130
  %v423 = vpop.f32.mrb[0].mxu0
  %v424 = vadd.f32 %v375, %v423
  %v425 = vpop.f32.mrb[0].mxu0
  %v426 = vpop.f32.mrb[0].mxu0
  %v427 = vadd.f32 %v378, %v426
  %v428 = vpop.f32.mrb[0].mxu0
  %429 = vdwg.mxu0
  %vm430 = vcmask 523264
  %v431 = vsel %vm430, %v416, 0.0
  %v432 = vsel %vm430, %v419, 0.0
  %v433 = vadd.f32 %v431, %v432
  %v434 = vsel %vm430, %v424, 0.0
  %v435 = vadd.f32 %v433, %v434
  %v436 = vsel %vm430, %v427, 0.0
  %v437 = vadd.f32 %v435, %v436
  %v438 = vrot.slane %v437, 4
  %v439 = vadd.f32 %v437, %v438
  %v440 = vrot.slane %v439, 2
  %v441 = vadd.f32 %v439, %v440
  %v442 = vrot.slane %v441, 1
  %v443 = vadd.f32 %v441, %v442
  %v444 = vrcp.pop 32.0
  %v445 = vmul.f32 %v443, %v444
  %v446 = vsub.f32 %v416, %v445
  %v447 = vsub.f32 %v419, %v445
  %v448 = vsub.f32 %v424, %v445
  %v449 = vsub.f32 %v427, %v445
  %v450 = vmul.f32 %v446, %v446
  %v451 = vmul.f32 %v447, %v447
  %v452 = vmul.f32 %v448, %v448
  %v453 = vmul.f32 %v449, %v449
  %v454 = vsel %vm430, %v450, 0.0
  %v455 = vsel %vm430, %v451, 0.0
  %v456 = vadd.f32 %v454, %v455
  %v457 = vsel %vm430, %v452, 0.0
  %v458 = vadd.f32 %v456, %v457
  %v459 = vsel %vm430, %v453, 0.0
  %v460 = vadd.f32 %v458, %v459
  %v461 = vrot.slane %v460, 4
  %v462 = vadd.f32 %v460, %v461
  %v463 = vrot.slane %v462, 2
  %v464 = vadd.f32 %v462, %v463
  %v465 = vrot.slane %v464, 1
  %v466 = vadd.f32 %v464, %v465
  %v467 = vmul.f32 %v466, %v444
  %v468 = vld [vmem:[%s3] sm:$0x1]
  %v469 = vadd.f32 %v467, 1e-05
  %v470 = vrsqrt.pop %v469
  %v471 = vmul.f32 %v468, %v470
  %v473 = vlaneseq
  %v474 = vshrl.u32 %v473, 7
  %v475 = vsub.s32 0, %v474
  %v476 = vrot.slane %v471, %v475
  %v478 = vmul.f32 %v446, %v476
  %v479 = vmul.f32 %v447, %v476
  %v480 = vmul.f32 %v448, %v476
  %v481 = vmul.f32 %v449, %v476
  %v482 = vld [vmem:[%s4] sm:$0x1]
  %v484 = vlaneseq
  %v485 = vshrl.u32 %v484, 7
  %v486 = vsub.s32 0, %v485
  %v487 = vrot.slane %v482, %v486
  %v489 = vadd.f32 %v478, %v487
  %v490 = vadd.f32 %v479, %v487
  %v491 = vadd.f32 %v480, %v487
  %v492 = vadd.f32 %v481, %v487
  %vm493 = vcmp.gt.f32.partialorder %v489, 0.0
  %vm494 = vcmp.gt.f32.partialorder %v490, 0.0
  %vm495 = vcmp.gt.f32.partialorder %v491, 0.0
  %vm496 = vcmp.gt.f32.partialorder %v492, 0.0
  %v497 = vmul.f32 %v489, 0.2
  %v498 = vmul.f32 %v490, 0.2
  %v499 = vmul.f32 %v491, 0.2
  %v500 = vmul.f32 %v492, 0.2
  %v501 = vsel %vm493, %v489, %v497
  %v502 = vsel %vm494, %v490, %v498
  %v503 = vsel %vm495, %v491, %v499
  %v504 = vsel %vm496, %v492, %v500
  %v505 = vpack.c.bf16 %v502, %v501
  %v506 = vpack.c.bf16 %v504, %v503
  %v509 = vunpack.c.l.b16 %v505
  %v510 = vunpack.c.h.b16 %v505
  %v511 = vunpack.c.l.b16 %v506
  %v512 = vunpack.c.h.b16 %v506
  %v513 = vpack.c.b16 %v509, %v509
  %v514 = vpack.c.b16 %v510, %v510
  %v515 = vpack.c.b16 %v511, %v511
  %v516 = vpack.c.b16 %v512, %v512
  %vm521 = vcmask 519168
  %522 = vst.msk [vmem:[%s5] sm:$0xf] %vm521, %v513
  %523 = vst.msk [vmem:[%s5 + $0x4] sm:$0xf] %vm521, %v514
  %524 = vst.msk [vmem:[%s5 + $0x8] sm:$0xf] %vm521, %v515
  %525 = vst.msk [vmem:[%s5 + $0xc] sm:$0xf] %vm521, %v516
  // Predicated region
  $region22: #{discriminator_forward.6} parent=0 // pred_check
    _
  $region23: #{discriminator_forward.6} parent=0 // pred_check_branch
    %527 = sbr.rel (0) target = $region25
  $region24: #{discriminator_forward.6} parent=0 // pred_region
    _
  $region25: #{discriminator_forward.6} parent=0 // pred_fallthru
    _
  // Predicated region
  $region26: #{discriminator_forward.6} parent=0 // pred_check
    _
  $region27: #{discriminator_forward.6} parent=0 // pred_check_branch
    %529 = sbr.rel (0) target = $region29
  $region28: #{discriminator_forward.6} parent=0 // pred_region
    _
  $region29: #{discriminator_forward.6} parent=0 // pred_fallthru
    _

// kernel: discriminator_forward.7
$region0: #{discriminator_forward.7}
  #allocation0 [shape = 'u32[]', space=smem, size = 0x4, offset = 0x4, fixed_abs, tag = 'smem constant byte address 0x4 - core index']
  #allocation1 [shape = 'u32[144,128]{1,0:T(1,128)}', space=vmem, size = 0x12000, scoped, tag = 'internal scratch']
  #allocation2 [shape = 'f32[1,1]{1,0:T(1,128)S(1)}', space=vmem, size = 0x200, scoped, tag = 'scoped memory for discriminator_forward.7']
  %s0 = inlined_call_operand.vmem [shape: bf16[8,1024], index: 0, kind: input, shape index: {}]
  %s1 = inlined_call_operand.vmem [shape: bf16[1024,128], index: 1, kind: input, shape index: {}]
  %s2 = inlined_call_operand.vmem [shape: f32[1,128], index: 2, kind: input, shape index: {}]
  %s3 = inlined_call_operand.vmem [shape: f32[1,128], index: 3, kind: input, shape index: {}]
  %s4 = inlined_call_operand.vmem [shape: f32[1,128], index: 4, kind: input, shape index: {}]
  %s5 = inlined_call_operand.vmem [shape: f32[8,128], index: 5, kind: input, shape index: {}]
  %s6 = inlined_call_operand.vmem [shape: f32[2,8], index: 6, kind: input, shape index: {}]
  %s7 = inlined_call_operand.<no memory space> [shape: f32[1,1], index: 7, kind: input, shape index: {}]
  %s8 = inlined_call_operand.vmem [shape: f32[2,1], index: 8, kind: output, shape index: {}]
  %s9 = sld [smem:[#allocation0]]
  $region42: #{discriminator_forward.7} parent=0
    _
  %s11 = ssub.s32 1, %s9
  %s12 = scalar_select 0, %s11, %s9
  %v13 = vstv %s7
  %14 = vst [vmem:[#allocation2] sm:$0x1] %v13
  // Predicated region
  $region2: #{discriminator_forward.7} parent=0 // pred_check
    _
  $region3: #{discriminator_forward.7} parent=0 // pred_check_branch
    %16 = sbr.rel (0) target = $region5
  $region4: #{discriminator_forward.7} parent=0 // pred_region
    _
  $region5: #{discriminator_forward.7} parent=0 // pred_fallthru
    _
  // Predicated region
  $region6: #{discriminator_forward.7} parent=0 // pred_check
    _
  $region7: #{discriminator_forward.7} parent=0 // pred_check_branch
    %18 = sbr.rel (0) target = $region9
  $region8: #{discriminator_forward.7} parent=0 // pred_region
    _
  $region9: #{discriminator_forward.7} parent=0 // pred_fallthru
    _
  // Predicated region
  $region10: #{discriminator_forward.7} parent=0 // pred_check
    _
  $region11: #{discriminator_forward.7} parent=0 // pred_check_branch
    %20 = sbr.rel (0) target = $region13
  $region12: #{discriminator_forward.7} parent=0 // pred_region
    _
  $region13: #{discriminator_forward.7} parent=0 // pred_fallthru
    _
  // Predicated region
  $region14: #{discriminator_forward.7} parent=0 // pred_check
    _
  $region15: #{discriminator_forward.7} parent=0 // pred_check_branch
    %22 = sbr.rel (0) target = $region17
  $region16: #{discriminator_forward.7} parent=0 // pred_region
    _
  $region17: #{discriminator_forward.7} parent=0 // pred_fallthru
    _
  // Predicated region
  $region18: #{discriminator_forward.7} parent=0 // pred_check
    _
  $region19: #{discriminator_forward.7} parent=0 // pred_check_branch
    %24 = sbr.rel (0) target = $region21
  $region20: #{discriminator_forward.7} parent=0 // pred_region
    _
  $region21: #{discriminator_forward.7} parent=0 // pred_fallthru
    _
  // Predicated region
  $region22: #{discriminator_forward.7} parent=0 // pred_check
    _
  $region23: #{discriminator_forward.7} parent=0 // pred_check_branch
    %26 = sbr.rel (0) target = $region25
  $region24: #{discriminator_forward.7} parent=0 // pred_region
    _
  $region25: #{discriminator_forward.7} parent=0 // pred_fallthru
    _
  // Predicated region
  $region26: #{discriminator_forward.7} parent=0 // pred_check
    _
  $region27: #{discriminator_forward.7} parent=0 // pred_check_branch
    %28 = sbr.rel (0) target = $region29
  $region28: #{discriminator_forward.7} parent=0 // pred_region
    _
  $region29: #{discriminator_forward.7} parent=0 // pred_fallthru
    _
  // Predicated region
  $region30: #{discriminator_forward.7} parent=0 // pred_check
    _
  $region31: #{discriminator_forward.7} parent=0 // pred_check_branch
    %30 = sbr.rel (0) target = $region33
  $region32: #{discriminator_forward.7} parent=0 // pred_region
    _
  $region33: #{discriminator_forward.7} parent=0 // pred_fallthru
    _
  %v32 = vld [vmem:[%s0] sm:$0xff]
  %v33 = vld [vmem:[%s0 + $0x8] sm:$0xff]
  %v34 = vld [vmem:[%s0 + $0x10] sm:$0xff]
  %v35 = vld [vmem:[%s0 + $0x18] sm:$0xff]
  %v36 = vld [vmem:[%s1] sm:$0xf]
  %v37 = vld [vmem:[%s1 + $0x4] sm:$0xf]
  %v38 = vld [vmem:[%s1 + $0x8] sm:$0xf]
  %v39 = vld [vmem:[%s1 + $0xc] sm:$0xf]
  %v40 = vld [vmem:[%s1 + $0x10] sm:$0xf]
  %v41 = vld [vmem:[%s1 + $0x14] sm:$0xf]
  %v42 = vld [vmem:[%s1 + $0x18] sm:$0xf]
  %v43 = vld [vmem:[%s1 + $0x1c] sm:$0xf]
  %v44 = vld [vmem:[%s1 + $0x20] sm:$0xf]
  %v45 = vld [vmem:[%s1 + $0x24] sm:$0xf]
  %v46 = vld [vmem:[%s1 + $0x28] sm:$0xf]
  %v47 = vld [vmem:[%s1 + $0x2c] sm:$0xf]
  %v48 = vld [vmem:[%s1 + $0x30] sm:$0xf]
  %v49 = vld [vmem:[%s1 + $0x34] sm:$0xf]
  %v50 = vld [vmem:[%s1 + $0x38] sm:$0xf]
  %v51 = vld [vmem:[%s1 + $0x3c] sm:$0xf]
  %v52 = vld [vmem:[%s1 + $0x40] sm:$0xf]
  %v53 = vld [vmem:[%s1 + $0x44] sm:$0xf]
  %v54 = vld [vmem:[%s1 + $0x48] sm:$0xf]
  %v55 = vld [vmem:[%s1 + $0x4c] sm:$0xf]
  %v56 = vld [vmem:[%s1 + $0x50] sm:$0xf]
  %v57 = vld [vmem:[%s1 + $0x54] sm:$0xf]
  %v58 = vld [vmem:[%s1 + $0x58] sm:$0xf]
  %v59 = vld [vmem:[%s1 + $0x5c] sm:$0xf]
  %v60 = vld [vmem:[%s1 + $0x60] sm:$0xf]
  %v61 = vld [vmem:[%s1 + $0x64] sm:$0xf]
  %v62 = vld [vmem:[%s1 + $0x68] sm:$0xf]
  %v63 = vld [vmem:[%s1 + $0x6c] sm:$0xf]
  %v64 = vld [vmem:[%s1 + $0x70] sm:$0xf]
  %v65 = vld [vmem:[%s1 + $0x74] sm:$0xf]
  %v66 = vld [vmem:[%s1 + $0x78] sm:$0xf]
  %v67 = vld [vmem:[%s1 + $0x7c] sm:$0xf]
  %v68 = vld [vmem:[%s1 + $0x80] sm:$0xf]
  %v69 = vld [vmem:[%s1 + $0x84] sm:$0xf]
  %v70 = vld [vmem:[%s1 + $0x88] sm:$0xf]
  %v71 = vld [vmem:[%s1 + $0x8c] sm:$0xf]
  %v72 = vld [vmem:[%s1 + $0x90] sm:$0xf]
  %v73 = vld [vmem:[%s1 + $0x94] sm:$0xf]
  %v74 = vld [vmem:[%s1 + $0x98] sm:$0xf]
  %v75 = vld [vmem:[%s1 + $0x9c] sm:$0xf]
  %v76 = vld [vmem:[%s1 + $0xa0] sm:$0xf]
  %v77 = vld [vmem:[%s1 + $0xa4] sm:$0xf]
  %v78 = vld [vmem:[%s1 + $0xa8] sm:$0xf]
  %v79 = vld [vmem:[%s1 + $0xac] sm:$0xf]
  %v80 = vld [vmem:[%s1 + $0xb0] sm:$0xf]
  %v81 = vld [vmem:[%s1 + $0xb4] sm:$0xf]
  %v82 = vld [vmem:[%s1 + $0xb8] sm:$0xf]
  %v83 = vld [vmem:[%s1 + $0xbc] sm:$0xf]
  %v84 = vld [vmem:[%s1 + $0xc0] sm:$0xf]
  %v85 = vld [vmem:[%s1 + $0xc4] sm:$0xf]
  %v86 = vld [vmem:[%s1 + $0xc8] sm:$0xf]
  %v87 = vld [vmem:[%s1 + $0xcc] sm:$0xf]
  %v88 = vld [vmem:[%s1 + $0xd0] sm:$0xf]
  %v89 = vld [vmem:[%s1 + $0xd4] sm:$0xf]
  %v90 = vld [vmem:[%s1 + $0xd8] sm:$0xf]
  %v91 = vld [vmem:[%s1 + $0xdc] sm:$0xf]
  %v92 = vld [vmem:[%s1 + $0xe0] sm:$0xf]
  %v93 = vld [vmem:[%s1 + $0xe4] sm:$0xf]
  %v94 = vld [vmem:[%s1 + $0xe8] sm:$0xf]
  %v95 = vld [vmem:[%s1 + $0xec] sm:$0xf]
  %v96 = vld [vmem:[%s1 + $0xf0] sm:$0xf]
  %v97 = vld [vmem:[%s1 + $0xf4] sm:$0xf]
  %v98 = vld [vmem:[%s1 + $0xf8] sm:$0xf]
  %v99 = vld [vmem:[%s1 + $0xfc] sm:$0xf]
  %v100 = vld [vmem:[%s1 + $0x100] sm:$0xf]
  %v101 = vld [vmem:[%s1 + $0x104] sm:$0xf]
  %v102 = vld [vmem:[%s1 + $0x108] sm:$0xf]
  %v103 = vld [vmem:[%s1 + $0x10c] sm:$0xf]
  %v104 = vld [vmem:[%s1 + $0x110] sm:$0xf]
  %v105 = vld [vmem:[%s1 + $0x114] sm:$0xf]
  %v106 = vld [vmem:[%s1 + $0x118] sm:$0xf]
  %v107 = vld [vmem:[%s1 + $0x11c] sm:$0xf]
  %v108 = vld [vmem:[%s1 + $0x120] sm:$0xf]
  %v109 = vld [vmem:[%s1 + $0x124] sm:$0xf]
  %v110 = vld [vmem:[%s1 + $0x128] sm:$0xf]
  %v111 = vld [vmem:[%s1 + $0x12c] sm:$0xf]
  %v112 = vld [vmem:[%s1 + $0x130] sm:$0xf]
  %v113 = vld [vmem:[%s1 + $0x134] sm:$0xf]
  %v114 = vld [vmem:[%s1 + $0x138] sm:$0xf]
  %v115 = vld [vmem:[%s1 + $0x13c] sm:$0xf]
  %v116 = vld [vmem:[%s1 + $0x140] sm:$0xf]
  %v117 = vld [vmem:[%s1 + $0x144] sm:$0xf]
  %v118 = vld [vmem:[%s1 + $0x148] sm:$0xf]
  %v119 = vld [vmem:[%s1 + $0x14c] sm:$0xf]
  %v120 = vld [vmem:[%s1 + $0x150] sm:$0xf]
  %v121 = vld [vmem:[%s1 + $0x154] sm:$0xf]
  %v122 = vld [vmem:[%s1 + $0x158] sm:$0xf]
  %v123 = vld [vmem:[%s1 + $0x15c] sm:$0xf]
  %v124 = vld [vmem:[%s1 + $0x160] sm:$0xf]
  %v125 = vld [vmem:[%s1 + $0x164] sm:$0xf]
  %v126 = vld [vmem:[%s1 + $0x168] sm:$0xf]
  %v127 = vld [vmem:[%s1 + $0x16c] sm:$0xf]
  %v128 = vld [vmem:[%s1 + $0x170] sm:$0xf]
  %v129 = vld [vmem:[%s1 + $0x174] sm:$0xf]
  %v130 = vld [vmem:[%s1 + $0x178] sm:$0xf]
  %v131 = vld [vmem:[%s1 + $0x17c] sm:$0xf]
  %v132 = vld [vmem:[%s1 + $0x180] sm:$0xf]
  %v133 = vld [vmem:[%s1 + $0x184] sm:$0xf]
  %v134 = vld [vmem:[%s1 + $0x188] sm:$0xf]
  %v135 = vld [vmem:[%s1 + $0x18c] sm:$0xf]
  %v136 = vld [vmem:[%s1 + $0x190] sm:$0xf]
  %v137 = vld [vmem:[%s1 + $0x194] sm:$0xf]
  %v138 = vld [vmem:[%s1 + $0x198] sm:$0xf]
  %v139 = vld [vmem:[%s1 + $0x19c] sm:$0xf]
  %v140 = vld [vmem:[%s1 + $0x1a0] sm:$0xf]
  %v141 = vld [vmem:[%s1 + $0x1a4] sm:$0xf]
  %v142 = vld [vmem:[%s1 + $0x1a8] sm:$0xf]
  %v143 = vld [vmem:[%s1 + $0x1ac] sm:$0xf]
  %v144 = vld [vmem:[%s1 + $0x1b0] sm:$0xf]
  %v145 = vld [vmem:[%s1 + $0x1b4] sm:$0xf]
  %v146 = vld [vmem:[%s1 + $0x1b8] sm:$0xf]
  %v147 = vld [vmem:[%s1 + $0x1bc] sm:$0xf]
  %v148 = vld [vmem:[%s1 + $0x1c0] sm:$0xf]
  %v149 = vld [vmem:[%s1 + $0x1c4] sm:$0xf]
  %v150 = vld [vmem:[%s1 + $0x1c8] sm:$0xf]
  %v151 = vld [vmem:[%s1 + $0x1cc] sm:$0xf]
  %v152 = vld [vmem:[%s1 + $0x1d0] sm:$0xf]
  %v153 = vld [vmem:[%s1 + $0x1d4] sm:$0xf]
  %v154 = vld [vmem:[%s1 + $0x1d8] sm:$0xf]
  %v155 = vld [vmem:[%s1 + $0x1dc] sm:$0xf]
  %v156 = vld [vmem:[%s1 + $0x1e0] sm:$0xf]
  %v157 = vld [vmem:[%s1 + $0x1e4] sm:$0xf]
  %v158 = vld [vmem:[%s1 + $0x1e8] sm:$0xf]
  %v159 = vld [vmem:[%s1 + $0x1ec] sm:$0xf]
  %v160 = vld [vmem:[%s1 + $0x1f0] sm:$0xf]
  %v161 = vld [vmem:[%s1 + $0x1f4] sm:$0xf]
  %v162 = vld [vmem:[%s1 + $0x1f8] sm:$0xf]
  %v163 = vld [vmem:[%s1 + $0x1fc] sm:$0xf]
  %v164 = vld [vmem:[%s2] sm:$0x1]
  %v166 = vlaneseq
  %v167 = vshrl.u32 %v166, 7
  %v168 = vsub.s32 0, %v167
  %v169 = vrot.slane %v164, %v168
  %v175 = vunpack.c.l.b16 %v32
  %v176 = vunpack.c.h.b16 %v32
  %v177 = vunpack.c.l.b16 %v33
  %v178 = vunpack.c.h.b16 %v33
  %v179 = vunpack.c.l.b16 %v34
  %v180 = vunpack.c.h.b16 %v34
  %v181 = vunpack.c.l.b16 %v35
  %v182 = vunpack.c.h.b16 %v35
  %v183 = vpack.c.b16 %v175, %v175
  %v184 = vpack.c.b16 %v176, %v176
  %v185 = vpack.c.b16 %v177, %v177
  %v186 = vpack.c.b16 %v178, %v178
  %v187 = vpack.c.b16 %v179, %v179
  %v188 = vpack.c.b16 %v180, %v180
  %v189 = vpack.c.b16 %v181, %v181
  %v190 = vpack.c.b16 %v182, %v182
  %v327 = vunpack.c.l.b16 %v36
  %v328 = vunpack.c.l.b16 %v37
  %v329 = vunpack.c.l.b16 %v38
  %v330 = vunpack.c.l.b16 %v39
  %v331 = vunpack.c.l.b16 %v40
  %v332 = vunpack.c.l.b16 %v41
  %v333 = vunpack.c.l.b16 %v42
  %v334 = vunpack.c.l.b16 %v43
  %v335 = vunpack.c.l.b16 %v44
  %v336 = vunpack.c.l.b16 %v45
  %v337 = vunpack.c.l.b16 %v46
  %v338 = vunpack.c.l.b16 %v47
  %v339 = vunpack.c.l.b16 %v48
  %v340 = vunpack.c.l.b16 %v49
  %v341 = vunpack.c.l.b16 %v50
  %v342 = vunpack.c.l.b16 %v51
  %v343 = vunpack.c.l.b16 %v52
  %v344 = vunpack.c.l.b16 %v53
  %v345 = vunpack.c.l.b16 %v54
  %v346 = vunpack.c.l.b16 %v55
  %v347 = vunpack.c.l.b16 %v56
  %v348 = vunpack.c.l.b16 %v57
  %v349 = vunpack.c.l.b16 %v58
  %v350 = vunpack.c.l.b16 %v59
  %v351 = vunpack.c.l.b16 %v60
  %v352 = vunpack.c.l.b16 %v61
  %v353 = vunpack.c.l.b16 %v62
  %v354 = vunpack.c.l.b16 %v63
  %v355 = vunpack.c.l.b16 %v64
  %v356 = vunpack.c.l.b16 %v65
  %v357 = vunpack.c.l.b16 %v66
  %v358 = vunpack.c.l.b16 %v67
  %v359 = vunpack.c.l.b16 %v68
  %v360 = vunpack.c.l.b16 %v69
  %v361 = vunpack.c.l.b16 %v70
  %v362 = vunpack.c.l.b16 %v71
  %v363 = vunpack.c.l.b16 %v72
  %v364 = vunpack.c.l.b16 %v73
  %v365 = vunpack.c.l.b16 %v74
  %v366 = vunpack.c.l.b16 %v75
  %v367 = vunpack.c.l.b16 %v76
  %v368 = vunpack.c.l.b16 %v77
  %v369 = vunpack.c.l.b16 %v78
  %v370 = vunpack.c.l.b16 %v79
  %v371 = vunpack.c.l.b16 %v80
  %v372 = vunpack.c.l.b16 %v81
  %v373 = vunpack.c.l.b16 %v82
  %v374 = vunpack.c.l.b16 %v83
  %v375 = vunpack.c.l.b16 %v84
  %v376 = vunpack.c.l.b16 %v85
  %v377 = vunpack.c.l.b16 %v86
  %v378 = vunpack.c.l.b16 %v87
  %v379 = vunpack.c.l.b16 %v88
  %v380 = vunpack.c.l.b16 %v89
  %v381 = vunpack.c.l.b16 %v90
  %v382 = vunpack.c.l.b16 %v91
  %v383 = vunpack.c.l.b16 %v92
  %v384 = vunpack.c.l.b16 %v93
  %v385 = vunpack.c.l.b16 %v94
  %v386 = vunpack.c.l.b16 %v95
  %v387 = vunpack.c.l.b16 %v96
  %v388 = vunpack.c.l.b16 %v97
  %v389 = vunpack.c.l.b16 %v98
  %v390 = vunpack.c.l.b16 %v99
  %v391 = vunpack.c.l.b16 %v100
  %v392 = vunpack.c.l.b16 %v101
  %v393 = vunpack.c.l.b16 %v102
  %v394 = vunpack.c.l.b16 %v103
  %v395 = vunpack.c.l.b16 %v104
  %v396 = vunpack.c.l.b16 %v105
  %v397 = vunpack.c.l.b16 %v106
  %v398 = vunpack.c.l.b16 %v107
  %v399 = vunpack.c.l.b16 %v108
  %v400 = vunpack.c.l.b16 %v109
  %v401 = vunpack.c.l.b16 %v110
  %v402 = vunpack.c.l.b16 %v111
  %v403 = vunpack.c.l.b16 %v112
  %v404 = vunpack.c.l.b16 %v113
  %v405 = vunpack.c.l.b16 %v114
  %v406 = vunpack.c.l.b16 %v115
  %v407 = vunpack.c.l.b16 %v116
  %v408 = vunpack.c.l.b16 %v117
  %v409 = vunpack.c.l.b16 %v118
  %v410 = vunpack.c.l.b16 %v119
  %v411 = vunpack.c.l.b16 %v120
  %v412 = vunpack.c.l.b16 %v121
  %v413 = vunpack.c.l.b16 %v122
  %v414 = vunpack.c.l.b16 %v123
  %v415 = vunpack.c.l.b16 %v124
  %v416 = vunpack.c.l.b16 %v125
  %v417 = vunpack.c.l.b16 %v126
  %v418 = vunpack.c.l.b16 %v127
  %v419 = vunpack.c.l.b16 %v128
  %v420 = vunpack.c.l.b16 %v129
  %v421 = vunpack.c.l.b16 %v130
  %v422 = vunpack.c.l.b16 %v131
  %v423 = vunpack.c.l.b16 %v132
  %v424 = vunpack.c.l.b16 %v133
  %v425 = vunpack.c.l.b16 %v134
  %v426 = vunpack.c.l.b16 %v135
  %v427 = vunpack.c.l.b16 %v136
  %v428 = vunpack.c.l.b16 %v137
  %v429 = vunpack.c.l.b16 %v138
  %v430 = vunpack.c.l.b16 %v139
  %v431 = vunpack.c.l.b16 %v140
  %v432 = vunpack.c.l.b16 %v141
  %v433 = vunpack.c.l.b16 %v142
  %v434 = vunpack.c.l.b16 %v143
  %v435 = vunpack.c.l.b16 %v144
  %v436 = vunpack.c.l.b16 %v145
  %v437 = vunpack.c.l.b16 %v146
  %v438 = vunpack.c.l.b16 %v147
  %v439 = vunpack.c.l.b16 %v148
  %v440 = vunpack.c.l.b16 %v149
  %v441 = vunpack.c.l.b16 %v150
  %v442 = vunpack.c.l.b16 %v151
  %v443 = vunpack.c.l.b16 %v152
  %v444 = vunpack.c.l.b16 %v153
  %v445 = vunpack.c.l.b16 %v154
  %v446 = vunpack.c.l.b16 %v155
  %v447 = vunpack.c.l.b16 %v156
  %v448 = vunpack.c.l.b16 %v157
  %v449 = vunpack.c.l.b16 %v158
  %v450 = vunpack.c.l.b16 %v159
  %v451 = vunpack.c.l.b16 %v160
  %v452 = vunpack.c.l.b16 %v161
  %v453 = vunpack.c.l.b16 %v162
  %v454 = vunpack.c.l.b16 %v163
  %v455 = vpack.c.b16 %v328, %v327
  %v456 = vpack.c.b16 %v330, %v329
  %v457 = vpack.c.b16 %v332, %v331
  %v458 = vpack.c.b16 %v334, %v333
  %v459 = vpack.c.b16 %v336, %v335
  %v460 = vpack.c.b16 %v338, %v337
  %v461 = vpack.c.b16 %v340, %v339
  %v462 = vpack.c.b16 %v342, %v341
  %v463 = vpack.c.b16 %v344, %v343
  %v464 = vpack.c.b16 %v346, %v345
  %v465 = vpack.c.b16 %v348, %v347
  %v466 = vpack.c.b16 %v350, %v349
  %v467 = vpack.c.b16 %v352, %v351
  %v468 = vpack.c.b16 %v354, %v353
  %v469 = vpack.c.b16 %v356, %v355
  %v470 = vpack.c.b16 %v358, %v357
  %v471 = vpack.c.b16 %v360, %v359
  %v472 = vpack.c.b16 %v362, %v361
  %v473 = vpack.c.b16 %v364, %v363
  %v474 = vpack.c.b16 %v366, %v365
  %v475 = vpack.c.b16 %v368, %v367
  %v476 = vpack.c.b16 %v370, %v369
  %v477 = vpack.c.b16 %v372, %v371
  %v478 = vpack.c.b16 %v374, %v373
  %v479 = vpack.c.b16 %v376, %v375
  %v480 = vpack.c.b16 %v378, %v377
  %v481 = vpack.c.b16 %v380, %v379
  %v482 = vpack.c.b16 %v382, %v381
  %v483 = vpack.c.b16 %v384, %v383
  %v484 = vpack.c.b16 %v386, %v385
  %v485 = vpack.c.b16 %v388, %v387
  %v486 = vpack.c.b16 %v390, %v389
  %v487 = vpack.c.b16 %v392, %v391
  %v488 = vpack.c.b16 %v394, %v393
  %v489 = vpack.c.b16 %v396, %v395
  %v490 = vpack.c.b16 %v398, %v397
  %v491 = vpack.c.b16 %v400, %v399
  %v492 = vpack.c.b16 %v402, %v401
  %v493 = vpack.c.b16 %v404, %v403
  %v494 = vpack.c.b16 %v406, %v405
  %v495 = vpack.c.b16 %v408, %v407
  %v496 = vpack.c.b16 %v410, %v409
  %v497 = vpack.c.b16 %v412, %v411
  %v498 = vpack.c.b16 %v414, %v413
  %v499 = vpack.c.b16 %v416, %v415
  %v500 = vpack.c.b16 %v418, %v417
  %v501 = vpack.c.b16 %v420, %v419
  %v502 = vpack.c.b16 %v422, %v421
  %v503 = vpack.c.b16 %v424, %v423
  %v504 = vpack.c.b16 %v426, %v425
  %v505 = vpack.c.b16 %v428, %v427
  %v506 = vpack.c.b16 %v430, %v429
  %v507 = vpack.c.b16 %v432, %v431
  %v508 = vpack.c.b16 %v434, %v433
  %v509 = vpack.c.b16 %v436, %v435
  %v510 = vpack.c.b16 %v438, %v437
  %v511 = vpack.c.b16 %v440, %v439
  %v512 = vpack.c.b16 %v442, %v441
  %v513 = vpack.c.b16 %v444, %v443
  %v514 = vpack.c.b16 %v446, %v445
  %v515 = vpack.c.b16 %v448, %v447
  %v516 = vpack.c.b16 %v450, %v449
  %v517 = vpack.c.b16 %v452, %v451
  %v518 = vpack.c.b16 %v454, %v453
  %583 = vmatprep.subr.bf16.mxu0 0
  %584 = vmatpush1.bf16.msra.mxu0 %v455
  %585 = vmatprep.subr.bf16.mxu0 0
  %586 = vmatpush1.bf16.msra.mxu0 %v456
  %587 = vmatprep.subr.bf16.mxu0 0
  %588 = vmatpush1.bf16.msra.mxu0 %v457
  %589 = vmatprep.subr.bf16.mxu0 0
  %590 = vmatpush1.bf16.msra.mxu0 %v458
  %591 = vmatprep.subr.bf16.mxu0 0
  %592 = vmatpush1.bf16.msra.mxu0 %v459
  %593 = vmatprep.subr.bf16.mxu0 0
  %594 = vmatpush1.bf16.msra.mxu0 %v460
  %595 = vmatprep.subr.bf16.mxu0 0
  %596 = vmatpush1.bf16.msra.mxu0 %v461
  %597 = vmatprep.subr.bf16.mxu0 0
  %598 = vmatpush1.bf16.msra.mxu0 %v462
  %599 = vmatprep.subr.bf16.mxu0 0
  %600 = vmatpush1.bf16.msra.mxu0 %v463
  %601 = vmatprep.subr.bf16.mxu0 0
  %602 = vmatpush1.bf16.msra.mxu0 %v464
  %603 = vmatprep.subr.bf16.mxu0 0
  %604 = vmatpush1.bf16.msra.mxu0 %v465
  %605 = vmatprep.subr.bf16.mxu0 0
  %606 = vmatpush1.bf16.msra.mxu0 %v466
  %607 = vmatprep.subr.bf16.mxu0 0
  %608 = vmatpush1.bf16.msra.mxu0 %v467
  %609 = vmatprep.subr.bf16.mxu0 0
  %610 = vmatpush1.bf16.msra.mxu0 %v468
  %611 = vmatprep.subr.bf16.mxu0 0
  %612 = vmatpush1.bf16.msra.mxu0 %v469
  %613 = vmatprep.subr.bf16.mxu0 0
  %614 = vmatpush1.bf16.msra.mxu0 %v470
  %615 = vmatprep.mubr.bf16.mxu0 %v184
  %616 = vmatmul.mubr.bf16.gmra.mrb[0].mxu0 %v183
  %v617 = vpop.f32.mrb[0].mxu0
  %v618 = vadd.f32 %v169, %v617
  %v619 = vpop.f32.mrb[0].mxu0
  %v620 = vpop.f32.mrb[0].mxu0
  %v621 = vpop.f32.mrb[0].mxu0
  %622 = vdwg.mxu0
  %623 = vmatprep.subr.bf16.mxu0 0
  %624 = vmatpush1.bf16.msra.mxu0 %v471
  %625 = vmatprep.subr.bf16.mxu0 0
  %626 = vmatpush1.bf16.msra.mxu0 %v472
  %627 = vmatprep.subr.bf16.mxu0 0
  %628 = vmatpush1.bf16.msra.mxu0 %v473
  %629 = vmatprep.subr.bf16.mxu0 0
  %630 = vmatpush1.bf16.msra.mxu0 %v474
  %631 = vmatprep.subr.bf16.mxu0 0
  %632 = vmatpush1.bf16.msra.mxu0 %v475
  %633 = vmatprep.subr.bf16.mxu0 0
  %634 = vmatpush1.bf16.msra.mxu0 %v476
  %635 = vmatprep.subr.bf16.mxu0 0
  %636 = vmatpush1.bf16.msra.mxu0 %v477
  %637 = vmatprep.subr.bf16.mxu0 0
  %638 = vmatpush1.bf16.msra.mxu0 %v478
  %639 = vmatprep.subr.bf16.mxu0 0
  %640 = vmatpush1.bf16.msra.mxu0 %v479
  %641 = vmatprep.subr.bf16.mxu0 0
  %642 = vmatpush1.bf16.msra.mxu0 %v480
  %643 = vmatprep.subr.bf16.mxu0 0
  %644 = vmatpush1.bf16.msra.mxu0 %v481
  %645 = vmatprep.subr.bf16.mxu0 0
  %646 = vmatpush1.bf16.msra.mxu0 %v482
  %647 = vmatprep.subr.bf16.mxu0 0
  %648 = vmatpush1.bf16.msra.mxu0 %v483
  %649 = vmatprep.subr.bf16.mxu0 0
  %650 = vmatpush1.bf16.msra.mxu0 %v484
  %651 = vmatprep.subr.bf16.mxu0 0
  %652 = vmatpush1.bf16.msra.mxu0 %v485
  %653 = vmatprep.subr.bf16.mxu0 0
  %654 = vmatpush1.bf16.msra.mxu0 %v486
  %655 = vmatprep.mubr.bf16.mxu0 %v186
  %656 = vmatmul.mubr.bf16.gmra.mrb[0].mxu0 %v185
  %v657 = vpop.f32.mrb[0].mxu0
  %v658 = vadd.f32 %v618, %v657
  %v659 = vpop.f32.mrb[0].mxu0
  %v660 = vpop.f32.mrb[0].mxu0
  %v661 = vpop.f32.mrb[0].mxu0
  %662 = vdwg.mxu0
  %663 = vmatprep.subr.bf16.mxu0 0
  %664 = vmatpush1.bf16.msra.mxu0 %v487
  %665 = vmatprep.subr.bf16.mxu0 0
  %666 = vmatpush1.bf16.msra.mxu0 %v488
  %667 = vmatprep.subr.bf16.mxu0 0
  %668 = vmatpush1.bf16.msra.mxu0 %v489
  %669 = vmatprep.subr.bf16.mxu0 0
  %670 = vmatpush1.bf16.msra.mxu0 %v490
  %671 = vmatprep.subr.bf16.mxu0 0
  %672 = vmatpush1.bf16.msra.mxu0 %v491
  %673 = vmatprep.subr.bf16.mxu0 0
  %674 = vmatpush1.bf16.msra.mxu0 %v492
  %675 = vmatprep.subr.bf16.mxu0 0
  %676 = vmatpush1.bf16.msra.mxu0 %v493
  %677 = vmatprep.subr.bf16.mxu0 0
  %678 = vmatpush1.bf16.msra.mxu0 %v494
  %679 = vmatprep.subr.bf16.mxu0 0
  %680 = vmatpush1.bf16.msra.mxu0 %v495
  %681 = vmatprep.subr.bf16.mxu0 0
  %682 = vmatpush1.bf16.msra.mxu0 %v496
  %683 = vmatprep.subr.bf16.mxu0 0
  %684 = vmatpush1.bf16.msra.mxu0 %v497
  %685 = vmatprep.subr.bf16.mxu0 0
  %686 = vmatpush1.bf16.msra.mxu0 %v498
  %687 = vmatprep.subr.bf16.mxu0 0
  %688 = vmatpush1.bf16.msra.mxu0 %v499
  %689 = vmatprep.subr.bf16.mxu0 0
  %690 = vmatpush1.bf16.msra.mxu0 %v500
  %691 = vmatprep.subr.bf16.mxu0 0
  %692 = vmatpush1.bf16.msra.mxu0 %v501
  %693 = vmatprep.subr.bf16.mxu0 0
  %694 = vmatpush1.bf16.msra.mxu0 %v502
  %695 = vmatprep.mubr.bf16.mxu0 %v188
  %696 = vmatmul.mubr.bf16.gmra.mrb[0].mxu0 %v187
  %v697 = vpop.f32.mrb[0].mxu0
  %v698 = vadd.f32 %v658, %v697
  %v699 = vpop.f32.mrb[0].mxu0
  %v700 = vpop.f32.mrb[0].mxu0
  %v701 = vpop.f32.mrb[0].mxu0
  %702 = vdwg.mxu0
  %703 = vmatprep.subr.bf16.mxu0 0
  %704 = vmatpush1.bf16.msra.mxu0 %v503
  %705 = vmatprep.subr.bf16.mxu0 0
  %706 = vmatpush1.bf16.msra.mxu0 %v504
  %707 = vmatprep.subr.bf16.mxu0 0
  %708 = vmatpush1.bf16.msra.mxu0 %v505
  %709 = vmatprep.subr.bf16.mxu0 0
  %710 = vmatpush1.bf16.msra.mxu0 %v506
  %711 = vmatprep.subr.bf16.mxu0 0
  %712 = vmatpush1.bf16.msra.mxu0 %v507
  %713 = vmatprep.subr.bf16.mxu0 0
  %714 = vmatpush1.bf16.msra.mxu0 %v508
  %715 = vmatprep.subr.bf16.mxu0 0
  %716 = vmatpush1.bf16.msra.mxu0 %v509
  %717 = vmatprep.subr.bf16.mxu0 0
  %718 = vmatpush1.bf16.msra.mxu0 %v510
  %719 = vmatprep.subr.bf16.mxu0 0
  %720 = vmatpush1.bf16.msra.mxu0 %v511
  %721 = vmatprep.subr.bf16.mxu0 0
  %722 = vmatpush1.bf16.msra.mxu0 %v512
  %723 = vmatprep.subr.bf16.mxu0 0
  %724 = vmatpush1.bf16.msra.mxu0 %v513
  %725 = vmatprep.subr.bf16.mxu0 0
  %726 = vmatpush1.bf16.msra.mxu0 %v514
  %727 = vmatprep.subr.bf16.mxu0 0
  %728 = vmatpush1.bf16.msra.mxu0 %v515
  %729 = vmatprep.subr.bf16.mxu0 0
  %730 = vmatpush1.bf16.msra.mxu0 %v516
  %731 = vmatprep.subr.bf16.mxu0 0
  %732 = vmatpush1.bf16.msra.mxu0 %v517
  %733 = vmatprep.subr.bf16.mxu0 0
  %734 = vmatpush1.bf16.msra.mxu0 %v518
  %735 = vmatprep.mubr.bf16.mxu0 %v190
  %736 = vmatmul.mubr.bf16.gmra.mrb[0].mxu0 %v189
  %v737 = vpop.f32.mrb[0].mxu0
  %v738 = vadd.f32 %v698, %v737
  %v739 = vpop.f32.mrb[0].mxu0
  %v740 = vpop.f32.mrb[0].mxu0
  %v741 = vpop.f32.mrb[0].mxu0
  %742 = vdwg.mxu0
  %v743 = vrot.slane %v738, 4
  %v744 = vadd.f32 %v738, %v743
  %v745 = vrot.slane %v744, 2
  %v746 = vadd.f32 %v744, %v745
  %v747 = vrot.slane %v746, 1
  %v748 = vadd.f32 %v746, %v747
  %v749 = vrcp.pop 8.0
  %v750 = vmul.f32 %v748, %v749
  %v751 = vsub.f32 %v738, %v750
  %v752 = vmul.f32 %v751, %v751
  %v753 = vrot.slane %v752, 4
  %v754 = vadd.f32 %v752, %v753
  %v755 = vrot.slane %v754, 2
  %v756 = vadd.f32 %v754, %v755
  %v757 = vrot.slane %v756, 1
  %v758 = vadd.f32 %v756, %v757
  %v759 = vmul.f32 %v758, %v749
  %v760 = vld [vmem:[%s3] sm:$0x1]
  %v761 = vadd.f32 %v759, 1e-05
  %v762 = vrsqrt.pop %v761
  %v763 = vmul.f32 %v760, %v762
  %v765 = vlaneseq
  %v766 = vshrl.u32 %v765, 7
  %v767 = vsub.s32 0, %v766
  %v768 = vrot.slane %v763, %v767
  %v770 = vmul.f32 %v751, %v768
  %v771 = vld [vmem:[%s4] sm:$0x1]
  %v773 = vlaneseq
  %v774 = vshrl.u32 %v773, 7
  %v775 = vsub.s32 0, %v774
  %v776 = vrot.slane %v771, %v775
  %v778 = vadd.f32 %v770, %v776
  %vm779 = vcmp.gt.f32.partialorder %v778, 0.0
  %v780 = vmul.f32 %v778, 0.2
  %v781 = vsel %vm779, %v778, %v780
  %v782 = vld [vmem:[%s5] sm:$0xff]
  %v783 = vmul.f32 %v781, %v782
  %v784 = vld [vmem:[%s6] sm:$0x3]
  %vm785 = vcmask 64512
  %v787 = vsel %vm785, %v784, 0
  %789 = vmatprep.subr.mxu0 0.0
  %790 = vmatpush1.msra.mxu0 %v783
  %791 = vmatprep.subr.mxu0 0.0
  %792 = vmatpush1.msra.mxu0 0.0
  %793 = vmatprep.subr.mxu0 0.0
  %794 = vmatpush1.msra.mxu0 0.0
  %795 = vmatprep.subr.mxu0 0.0
  %796 = vmatpush1.msra.mxu0 0.0
  %797 = vmatprep.subr.mxu0 0.0
  %798 = vmatpush1.msra.mxu0 0.0
  %799 = vmatprep.subr.mxu0 0.0
  %800 = vmatpush1.msra.mxu0 0.0
  %801 = vmatprep.subr.mxu0 0.0
  %802 = vmatpush1.msra.mxu0 0.0
  %803 = vmatprep.subr.mxu0 0.0
  %804 = vmatpush1.msra.mxu0 0.0
  %805 = vmatprep.subr.mxu0 0.0
  %806 = vmatpush1.msra.mxu0 0.0
  %807 = vmatprep.subr.mxu0 0.0
  %808 = vmatpush1.msra.mxu0 0.0
  %809 = vmatprep.subr.mxu0 0.0
  %810 = vmatpush1.msra.mxu0 0.0
  %811 = vmatprep.subr.mxu0 0.0
  %812 = vmatpush1.msra.mxu0 0.0
  %813 = vmatprep.subr.mxu0 0.0
  %814 = vmatpush1.msra.mxu0 0.0
  %815 = vmatprep.subr.mxu0 0.0
  %816 = vmatpush1.msra.mxu0 0.0
  %817 = vmatprep.subr.mxu0 0.0
  %818 = vmatpush1.msra.mxu0 0.0
  %819 = vmatprep.subr.mxu0 0.0
  %820 = vmatpush1.msra.mxu0 0.0
  %821 = vmatprep.subr.mxu0 0.0
  %822 = vmatpush1.msra.mxu0 0.0
  %823 = vmatprep.subr.mxu0 0.0
  %824 = vmatpush1.msra.mxu0 0.0
  %825 = vmatprep.subr.mxu0 0.0
  %826 = vmatpush1.msra.mxu0 0.0
  %827 = vmatprep.subr.mxu0 0.0
  %828 = vmatpush1.msra.mxu0 0.0
  %829 = vmatprep.subr.mxu0 0.0
  %830 = vmatpush1.msra.mxu0 0.0
  %831 = vmatprep.subr.mxu0 0.0
  %832 = vmatpush1.msra.mxu0 0.0
  %833 = vmatprep.subr.mxu0 0.0
  %834 = vmatpush1.msra.mxu0 0.0
  %835 = vmatprep.subr.mxu0 0.0
  %836 = vmatpush1.msra.mxu0 0.0
  %837 = vmatprep.subr.mxu0 0.0
  %838 = vmatpush1.msra.mxu0 0.0
  %839 = vmatprep.subr.mxu0 0.0
  %840 = vmatpush1.msra.mxu0 0.0
  %841 = vmatprep.subr.mxu0 0.0
  %842 = vmatpush1.msra.mxu0 0.0
  %843 = vmatprep.subr.mxu0 0.0
  %844 = vmatpush1.msra.mxu0 0.0
  %845 = vmatprep.subr.mxu0 0.0
  %846 = vmatpush1.msra.mxu0 0.0
  %847 = vmatprep.subr.mxu0 0.0
  %848 = vmatpush1.msra.mxu0 0.0
  %849 = vmatprep.subr.mxu0 0.0
  %850 = vmatpush1.msra.mxu0 0.0
  %851 = vmatprep.subr.mxu0 0.0
  %852 = vmatpush1.msra.mxu0 0.0
  %853 = vmatprep.mubr.f32.mxu0 0.0
  %854 = vmatmul.mubr.f32.gmra.mrb[0].mxu0 %v787
  %v855 = vpop.f32.mrb[0].mxu0
  %v856 = vadd.f32 0.0, %v855
  %v857 = vpop.f32.mrb[0].mxu0
  %858 = vdwg.mxu0
  %vm859 = vcmask 1041408
  %v860 = vsel %vm859, %v856, 0.0
  %861 = vadd.xlane.f32.xlu0 %v860
  %v862 = vpop.xlane.xlu0 %861
  %v863 = vld [vmem:[#allocation2] sm:$0x1]
  %v865 = vlaneseq
  %v866 = vshrl.u32 %v865, 7
  %v867 = vsub.s32 0, %v866
  %v868 = vrot.slane %v863, %v867
  %v870 = vadd.f32 %v862, %v868
  %vm871 = vcmask 1024
  %872 = vst.msk [vmem:[%s8] sm:$0x3] %vm871, %v870
  // Predicated region
  $region34: #{discriminator_forward.7} parent=0 // pred_check
    _
  $region35: #{discriminator_forward.7} parent=0 // pred_check_branch
    %874 = sbr.rel (0) target = $region37
  $region36: #{discriminator_forward.7} parent=0 // pred_region
    _
  $region37: #{discriminator_forward.7} parent=0 // pred_fallthru
    _
  // Predicated region
  $region38: #{discriminator_forward.7} parent=0 // pred_check
    _
  $region39: #{discriminator_forward.7} parent=0 // pred_check_branch
    %876 = sbr.rel (0) target = $region41
  $region40: #{discriminator_forward.7} parent=0 // pred_region
    _
  $region41: #{discriminator_forward.7} parent=0 // pred_fallthru
    _

</llo_original>
